<compile_context>
chip_gen: v5e
topology: v5e:2x2
jax: 0.10.0
libtpu: 0.0.40
codegen_flags: <defaults>
</compile_context>

<pallas_src>
import math
import jax
import jax.numpy as jnp
from jax.experimental import pallas as pl
from jax.experimental.pallas import tpu as pltpu

# ---- problem sizes (small, consistent with the module) ----
B, ST, SS = 2, 8, 16          # batch, target seq len, encoder (source) seq len
D, H, HF = 32, 4, 64          # model_dimension, number_of_heads, hidden_dimension
HD = D // H                   # head_dimension
BT, BS = B * ST, B * SS       # folded (batch*seq) extents
EPS = 1e-5                    # nn.LayerNorm default eps

assert D % H == 0
assert ST & (ST - 1) == 0 and SS & (SS - 1) == 0
LOG2_ST = ST.bit_length() - 1
LOG2_SS = SS.bit_length() - 1

# ---- packed-slab layout (shared by wrapper & kernel) ----
D_PAD = max(HF, D)            # slab lane width (64)
# bf16 weight slab: per-head blocks stacked along rows (offsets multiples of 16)
WQ_S = 0
WK_S = WQ_S + H * D
WVO_S = WK_S + H * D
WQ_C = WVO_S + H * D
WK_C = WQ_C + H * D
WVO_C = WK_C + H * D
W1_R = WVO_C + H * D
W2_R = W1_R + D
W_ROWS = W2_R + HF            # 864
# f32 bias / LayerNorm slab: each block starts at a multiple of 8 rows
BQ_S, BK_S, BVO_S, BO_S = 0, 8, 16, 24
BQ_C, BK_C, BVO_C, BO_C = 32, 40, 48, 56
B1_R, B2_R = 64, 72
LNG_R, LNB_R = 80, 88
P_ROWS = 96


# ---------------- Pallas kernel: full decoder layer, all batches at once -------
def decoder_layer_kernel(tgt_ref, enc_ref, w_ref, p_ref, out_ref):
    f32 = jnp.float32
    bf16 = jnp.bfloat16

    x = tgt_ref[...]                                  # (BT, D) f32 residual stream
    e_bf = enc_ref[...].astype(bf16)                  # (BS, D) bf16 (MXU input)

    # ---- additive masks built once in-kernel (shift/AND, no div/mod) ----
    rs = jax.lax.broadcasted_iota(jnp.int32, (BT, BT), 0)
    cs = jax.lax.broadcasted_iota(jnp.int32, (BT, BT), 1)
    ok_self = ((rs >> LOG2_ST) == (cs >> LOG2_ST)) & ((cs & (ST - 1)) <= (rs & (ST - 1)))
    bias_self = jnp.where(ok_self, 0.0, -1e9).astype(f32)

    rc = jax.lax.broadcasted_iota(jnp.int32, (BT, BS), 0)
    cc = jax.lax.broadcasted_iota(jnp.int32, (BT, BS), 1)
    ok_cross = (rc >> LOG2_ST) == (cc >> LOG2_SS)
    bias_cross = jnp.where(ok_cross, 0.0, -1e9).astype(f32)

    def dot_nn(a, b):                                 # (m,k)@(k,n), f32 accumulate
        return jnp.dot(a, b, preferred_element_type=f32)

    def dot_nt(a, b):                                 # (m,k)x(n,k)->(m,n), no k.T
        return jax.lax.dot_general(a, b, (((1,), (1,)), ((), ())),
                                   preferred_element_type=f32)

    def attend(xq_bf, kv_bf, wq_r, wk_r, wvo_r, bq_r, bk_r, bvo_r, bo_r, bias):
        """Multi-head attention on folded slabs; per-head weight blocks are
        row-stacked (tile-aligned slices), V & output projections pre-fused."""
        sq = xq_bf.shape[0]
        acc = jnp.zeros((sq, D), f32)
        for h in range(H):                            # static unroll, H = 4
            wq_h = w_ref[wq_r + h * D: wq_r + (h + 1) * D, 0:HD]     # (D, HD) bf16
            wk_h = w_ref[wk_r + h * D: wk_r + (h + 1) * D, 0:HD]
            wvo_h = w_ref[wvo_r + h * D: wvo_r + (h + 1) * D, 0:D]   # (D, D) fused
            q_h = dot_nn(xq_bf, wq_h) + p_ref[bq_r + h: bq_r + h + 1, 0:HD]
            k_h = dot_nn(kv_bf, wk_h) + p_ref[bk_r + h: bk_r + h + 1, 0:HD]
            vo_h = dot_nn(kv_bf, wvo_h) + p_ref[bvo_r + h: bvo_r + h + 1, 0:D]
            # scores (scale already folded into Wq/bq); logits & mask stay in f32
            s = dot_nt(q_h.astype(bf16), k_h.astype(bf16)) + bias
            m = jnp.max(s, axis=-1, keepdims=True)
            pmat = jnp.exp(s - m)
            denom = jnp.sum(pmat, axis=-1, keepdims=True)
            pmat = (pmat * pl.reciprocal(denom, approx=True)).astype(bf16)
            acc = acc + dot_nn(pmat, vo_h.astype(bf16))
        return acc + p_ref[bo_r: bo_r + 1, 0:D]

    def layernorm(v, j):
        g = p_ref[LNG_R + j: LNG_R + j + 1, 0:D]
        b = p_ref[LNB_R + j: LNB_R + j + 1, 0:D]
        mu = jnp.mean(v, axis=-1, keepdims=True)
        d = v - mu
        var = jnp.mean(d * d, axis=-1, keepdims=True)
        return d * jax.lax.rsqrt(var + EPS) * g + b

    # ---- masked self-attention + residual + LN1 ----
    x_bf = x.astype(bf16)
    sa = attend(x_bf, x_bf, WQ_S, WK_S, WVO_S, BQ_S, BK_S, BVO_S, BO_S, bias_self)
    x = layernorm(x + sa, 0)

    # ---- cross-attention on encoder output + residual + LN2 ----
    x_bf = x.astype(bf16)
    ca = attend(x_bf, e_bf, WQ_C, WK_C, WVO_C, BQ_C, BK_C, BVO_C, BO_C, bias_cross)
    x = layernorm(x + ca, 1)

    # ---- feed-forward + residual + LN3 ----
    x_bf = x.astype(bf16)
    h1 = jnp.maximum(dot_nn(x_bf, w_ref[W1_R:W1_R + D, 0:HF])
                     + p_ref[B1_R:B1_R + 1, 0:HF], 0.0)
    ff = dot_nn(h1.astype(bf16), w_ref[W2_R:W2_R + HF, 0:D]) + p_ref[B2_R:B2_R + 1, 0:D]
    x = layernorm(x + ff, 2)

    out_ref[...] = x.astype(out_ref.dtype)


# ---------------- wrapper: pack params into 2 slabs, single pallas_call --------
def pack_params(p):
    (wq_s, bq_s, wk_s, bk_s, wv_s, bv_s, wo_s, bo_s,
     wq_c, bq_c, wk_c, bk_c, wv_c, bv_c, wo_c, bo_c,
     w1, b1, w2, b2, ln_g, ln_b) = p
    scale = 1.0 / math.sqrt(HD)

    def qk_stack(w, do_scale):                        # (D,D) -> (H*D, HD)
        s = scale if do_scale else 1.0
        return jnp.concatenate([w[:, h * HD:(h + 1) * HD] * s for h in range(H)], axis=0)

    def vo_stack(wv, wo):                             # fused V @ Wout per head -> (H*D, D)
        return jnp.concatenate(
            [wv[:, h * HD:(h + 1) * HD] @ wo[h * HD:(h + 1) * HD, :] for h in range(H)], axis=0)

    def qk_bias(b, do_scale):                         # (1,D) -> (H, HD)
        s = scale if do_scale else 1.0
        return (b * s).reshape(H, HD)

    def vo_bias(bv, wo):                              # (1,D) -> (H, D)
        return jnp.concatenate(
            [bv[:, h * HD:(h + 1) * HD] @ wo[h * HD:(h + 1) * HD, :] for h in range(H)], axis=0)

    def put(slab, row, blk):
        r, c = blk.shape
        return slab.at[row:row + r, :c].set(blk)

    w = jnp.zeros((W_ROWS, D_PAD), jnp.float32)
    w = put(w, WQ_S, qk_stack(wq_s, True))
    w = put(w, WK_S, qk_stack(wk_s, False))
    w = put(w, WVO_S, vo_stack(wv_s, wo_s))
    w = put(w, WQ_C, qk_stack(wq_c, True))
    w = put(w, WK_C, qk_stack(wk_c, False))
    w = put(w, WVO_C, vo_stack(wv_c, wo_c))
    w = put(w, W1_R, w1)
    w = put(w, W2_R, w2)

    pp = jnp.zeros((P_ROWS, D_PAD), jnp.float32)
    pp = put(pp, BQ_S, qk_bias(bq_s, True))
    pp = put(pp, BK_S, qk_bias(bk_s, False))
    pp = put(pp, BVO_S, vo_bias(bv_s, wo_s))
    pp = put(pp, BO_S, bo_s)
    pp = put(pp, BQ_C, qk_bias(bq_c, True))
    pp = put(pp, BK_C, qk_bias(bk_c, False))
    pp = put(pp, BVO_C, vo_bias(bv_c, wo_c))
    pp = put(pp, BO_C, bo_c)
    pp = put(pp, B1_R, b1)
    pp = put(pp, B2_R, b2)
    pp = put(pp, LNG_R, ln_g)
    pp = put(pp, LNB_R, ln_b)

    return w.astype(jnp.bfloat16), pp


def transformer_decoder_layer(tgt, enc, wslab, pslab):
    """tgt: (B, ST, D), enc: (B, SS, D). Batch folded onto sublanes; cross-batch
    attention prevented by an in-kernel block-diagonal (+ causal) additive mask."""
    tgt2d = tgt.reshape(BT, D)
    enc2d = enc.reshape(BS, D)
    vmem = lambda: pl.BlockSpec(memory_space=pltpu.MemorySpace.VMEM)
    out = pl.pallas_call(
        decoder_layer_kernel,
        out_shape=jax.ShapeDtypeStruct((BT, D), jnp.float32),
        in_specs=[vmem(), vmem(), vmem(), vmem()],
        out_specs=vmem(),
    )(tgt2d, enc2d, wslab, pslab)
    return out.reshape(B, ST, D)


# ---------------- pure-JAX reference (f32, matches the PyTorch math) -----------
def _ref_layernorm(x, g, b):
    mu = jnp.mean(x, axis=-1, keepdims=True)
    d = x - mu
    var = jnp.mean(d * d, axis=-1, keepdims=True)
    return d * jax.lax.rsqrt(var + EPS) * g + b


def _ref_mha(q_in, kv_in, wq, bq, wk, bk, wv, bv, wo, bo, mask):
    q = q_in @ wq + bq
    k = kv_in @ wk + bk
    v = kv_in @ wv + bv
    sq, skv = q.shape[0], k.shape[0]
    qh = q.reshape(sq, H, HD).transpose(1, 0, 2)
    kh = k.reshape(skv, H, HD).transpose(1, 0, 2)
    vh = v.reshape(skv, H, HD).transpose(1, 0, 2)
    s = jnp.einsum('hqd,hkd->hqk', qh, kh) / math.sqrt(HD)
    if mask is not None:
        s = jnp.where(mask[None] == 0, -1e9, s)
    p = jax.nn.softmax(s, axis=-1)
    ctx = jnp.einsum('hqk,hkd->hqd', p, vh)
    return ctx.transpose(1, 0, 2).reshape(sq, D) @ wo + bo


def ref_forward(tgt, enc, p):
    (wq_s, bq_s, wk_s, bk_s, wv_s, bv_s, wo_s, bo_s,
     wq_c, bq_c, wk_c, bk_c, wv_c, bv_c, wo_c, bo_c,
     w1, b1, w2, b2, ln_g, ln_b) = p
    causal = jnp.tril(jnp.ones((ST, ST), jnp.float32))

    def one(x, e):
        sa = _ref_mha(x, x, wq_s, bq_s, wk_s, bk_s, wv_s, bv_s, wo_s, bo_s, causal)
        x = _ref_layernorm(x + sa, ln_g[0], ln_b[0])
        ca = _ref_mha(x, e, wq_c, bq_c, wk_c, bk_c, wv_c, bv_c, wo_c, bo_c, None)
        x = _ref_layernorm(x + ca, ln_g[1], ln_b[1])
        h = jnp.maximum(x @ w1 + b1, 0.0)
        ff = h @ w2 + b2
        return _ref_layernorm(x + ff, ln_g[2], ln_b[2])

    return jax.vmap(one)(tgt, enc)


if __name__ == "__main__":
    key = jax.random.PRNGKey(0)
    ks = jax.random.split(key, 24)
    s = 0.05

    # natural (PyTorch-layout, pre-transposed so y = x @ W + b) parameters
    wq_s = s * jax.random.normal(ks[0], (D, D), jnp.float32)
    bq_s = s * jax.random.normal(ks[1], (1, D), jnp.float32)
    wk_s = s * jax.random.normal(ks[2], (D, D), jnp.float32)
    bk_s = s * jax.random.normal(ks[3], (1, D), jnp.float32)
    wv_s = s * jax.random.normal(ks[4], (D, D), jnp.float32)
    bv_s = s * jax.random.normal(ks[5], (1, D), jnp.float32)
    wo_s = s * jax.random.normal(ks[6], (D, D), jnp.float32)
    bo_s = s * jax.random.normal(ks[7], (1, D), jnp.float32)
    wq_c = s * jax.random.normal(ks[8], (D, D), jnp.float32)
    bq_c = s * jax.random.normal(ks[9], (1, D), jnp.float32)
    wk_c = s * jax.random.normal(ks[10], (D, D), jnp.float32)
    bk_c = s * jax.random.normal(ks[11], (1, D), jnp.float32)
    wv_c = s * jax.random.normal(ks[12], (D, D), jnp.float32)
    bv_c = s * jax.random.normal(ks[13], (1, D), jnp.float32)
    wo_c = s * jax.random.normal(ks[14], (D, D), jnp.float32)
    bo_c = s * jax.random.normal(ks[15], (1, D), jnp.float32)
    w1 = s * jax.random.normal(ks[16], (D, HF), jnp.float32)
    b1 = s * jax.random.normal(ks[17], (1, HF), jnp.float32)
    w2 = s * jax.random.normal(ks[18], (HF, D), jnp.float32)
    b2 = s * jax.random.normal(ks[19], (1, D), jnp.float32)
    ln_g = 1.0 + 0.1 * jax.random.normal(ks[20], (3, D), jnp.float32)
    ln_b = 0.1 * jax.random.normal(ks[21], (3, D), jnp.float32)
    params = (wq_s, bq_s, wk_s, bk_s, wv_s, bv_s, wo_s, bo_s,
              wq_c, bq_c, wk_c, bk_c, wv_c, bv_c, wo_c, bo_c,
              w1, b1, w2, b2, ln_g, ln_b)

    # deterministic inputs
    tgt = jax.random.normal(ks[22], (B, ST, D), jnp.float32)
    enc = jax.random.normal(ks[23], (B, SS, D), jnp.float32)

    wslab, pslab = pack_params(params)
    out = transformer_decoder_layer(tgt, enc, wslab, pslab)
    out = jax.block_until_ready(out)

    ref = jax.block_until_ready(ref_forward(tgt, enc, params))
    assert out.shape == (B, ST, D)
    # bf16 MXU inputs + approx reciprocal => compare against f32 ref with 2e-2 tol
    assert jnp.allclose(out, ref, atol=2e-2, rtol=2e-2), (
        f"max diff {jnp.max(jnp.abs(out - ref))}")

    print("KERNEL_OK")
</pallas_src>

<mosaic_0001>
module attributes {stable_mosaic.version = 11 : i64} {
  func.func @decoder_layer_kernel(%arg0: memref<16x32xf32, #tpu.memory_space<vmem>>, %arg1: memref<32x32xf32, #tpu.memory_space<vmem>>, %arg2: memref<864x64xbf16, #tpu.memory_space<vmem>>, %arg3: memref<96x64xf32, #tpu.memory_space<vmem>>, %arg4: memref<16x32xf32, #tpu.memory_space<vmem>>) attributes {dimension_semantics = [], scalar_prefetch = 0 : i64, scratch_operands = 0 : i64, tpu.core_type = #tpu.core_type<tc>} {
    %c0 = arith.constant 0 : index
    %c0_0 = arith.constant 0 : index
    %0 = vector.load %arg0[%c0, %c0_0] : memref<16x32xf32, #tpu.memory_space<vmem>>, vector<16x32xf32>
    %c0_1 = arith.constant 0 : index
    %c0_2 = arith.constant 0 : index
    %1 = vector.load %arg1[%c0_1, %c0_2] : memref<32x32xf32, #tpu.memory_space<vmem>>, vector<32x32xf32>
    %2 = arith.truncf %1 : vector<32x32xf32> to vector<32x32xbf16>
    %3 = tpu.iota {dimensions = array<i32: 0>} : vector<16x16xi32>
    %4 = tpu.iota {dimensions = array<i32: 1>} : vector<16x16xi32>
    %c3_i32 = arith.constant 3 : i32
    %5 = vector.broadcast %c3_i32 : i32 to vector<16x16xi32>
    %6 = arith.shrsi %3, %5 : vector<16x16xi32>
    %c3_i32_3 = arith.constant 3 : i32
    %7 = vector.broadcast %c3_i32_3 : i32 to vector<16x16xi32>
    %8 = arith.shrsi %4, %7 : vector<16x16xi32>
    %9 = arith.cmpi eq, %6, %8 : vector<16x16xi32>
    %c7_i32 = arith.constant 7 : i32
    %10 = vector.broadcast %c7_i32 : i32 to vector<16x16xi32>
    %11 = arith.andi %4, %10 : vector<16x16xi32>
    %c7_i32_4 = arith.constant 7 : i32
    %12 = vector.broadcast %c7_i32_4 : i32 to vector<16x16xi32>
    %13 = arith.andi %3, %12 : vector<16x16xi32>
    %14 = arith.cmpi sle, %11, %13 : vector<16x16xi32>
    %15 = arith.andi %9, %14 : vector<16x16xi1>
    %cst = arith.constant 0.000000e+00 : f32
    %cst_5 = arith.constant -1.000000e+09 : f32
    %16 = vector.broadcast %cst : f32 to vector<16x16xf32>
    %17 = vector.broadcast %cst_5 : f32 to vector<16x16xf32>
    %18 = arith.select %15, %16, %17 : vector<16x16xi1>, vector<16x16xf32>
    %19 = tpu.iota {dimensions = array<i32: 0>} : vector<16x32xi32>
    %20 = tpu.iota {dimensions = array<i32: 1>} : vector<16x32xi32>
    %c3_i32_6 = arith.constant 3 : i32
    %21 = vector.broadcast %c3_i32_6 : i32 to vector<16x32xi32>
    %22 = arith.shrsi %19, %21 : vector<16x32xi32>
    %c4_i32 = arith.constant 4 : i32
    %23 = vector.broadcast %c4_i32 : i32 to vector<16x32xi32>
    %24 = arith.shrsi %20, %23 : vector<16x32xi32>
    %25 = arith.cmpi eq, %22, %24 : vector<16x32xi32>
    %cst_7 = arith.constant 0.000000e+00 : f32
    %cst_8 = arith.constant -1.000000e+09 : f32
    %26 = vector.broadcast %cst_7 : f32 to vector<16x32xf32>
    %27 = vector.broadcast %cst_8 : f32 to vector<16x32xf32>
    %28 = arith.select %25, %26, %27 : vector<16x32xi1>, vector<16x32xf32>
    %29 = arith.truncf %0 : vector<16x32xf32> to vector<16x32xbf16>
    %cst_9 = arith.constant 0.000000e+00 : f32
    %30 = vector.broadcast %cst_9 : f32 to vector<16x32xf32>
    %c0_10 = arith.constant 0 : index
    %c0_11 = arith.constant 0 : index
    %31 = vector.load %arg2[%c0_10, %c0_11] : memref<864x64xbf16, #tpu.memory_space<vmem>>, vector<32x8xbf16>
    %c128 = arith.constant 128 : index
    %c0_12 = arith.constant 0 : index
    %32 = vector.load %arg2[%c128, %c0_12] : memref<864x64xbf16, #tpu.memory_space<vmem>>, vector<32x8xbf16>
    %c256 = arith.constant 256 : index
    %c0_13 = arith.constant 0 : index
    %33 = vector.load %arg2[%c256, %c0_13] : memref<864x64xbf16, #tpu.memory_space<vmem>>, vector<32x32xbf16>
    %cst_14 = arith.constant dense<0.000000e+00> : vector<16x8xf32>
    %34 = tpu.matmul %29, %31, %cst_14 {dimension_numbers = #tpu.dot_dimension_numbers<[1], [0], [0], [1], [0, 0, 1, 1], [], []>} : vector<16x32xbf16>, vector<32x8xbf16>, vector<16x8xf32> -> vector<16x8xf32>
    %c0_15 = arith.constant 0 : index
    %c0_16 = arith.constant 0 : index
    %35 = vector.load %arg3[%c0_15, %c0_16] : memref<96x64xf32, #tpu.memory_space<vmem>>, vector<1x8xf32>
    %36 = vector.broadcast %35 : vector<1x8xf32> to vector<16x8xf32>
    %37 = arith.addf %34, %36 : vector<16x8xf32>
    %cst_17 = arith.constant dense<0.000000e+00> : vector<16x8xf32>
    %38 = tpu.matmul %29, %32, %cst_17 {dimension_numbers = #tpu.dot_dimension_numbers<[1], [0], [0], [1], [0, 0, 1, 1], [], []>} : vector<16x32xbf16>, vector<32x8xbf16>, vector<16x8xf32> -> vector<16x8xf32>
    %c8 = arith.constant 8 : index
    %c0_18 = arith.constant 0 : index
    %39 = vector.load %arg3[%c8, %c0_18] : memref<96x64xf32, #tpu.memory_space<vmem>>, vector<1x8xf32>
    %40 = vector.broadcast %39 : vector<1x8xf32> to vector<16x8xf32>
    %41 = arith.addf %38, %40 : vector<16x8xf32>
    %cst_19 = arith.constant dense<0.000000e+00> : vector<16x32xf32>
    %42 = tpu.matmul %29, %33, %cst_19 {dimension_numbers = #tpu.dot_dimension_numbers<[1], [0], [0], [1], [0, 0, 1, 1], [], []>} : vector<16x32xbf16>, vector<32x32xbf16>, vector<16x32xf32> -> vector<16x32xf32>
    %c16 = arith.constant 16 : index
    %c0_20 = arith.constant 0 : index
    %43 = vector.load %arg3[%c16, %c0_20] : memref<96x64xf32, #tpu.memory_space<vmem>>, vector<1x32xf32>
    %44 = vector.broadcast %43 : vector<1x32xf32> to vector<16x32xf32>
    %45 = arith.addf %42, %44 : vector<16x32xf32>
    %46 = arith.truncf %37 : vector<16x8xf32> to vector<16x8xbf16>
    %47 = arith.truncf %41 : vector<16x8xf32> to vector<16x8xbf16>
    %cst_21 = arith.constant dense<0.000000e+00> : vector<16x16xf32>
    %48 = tpu.matmul %46, %47, %cst_21 {dimension_numbers = #tpu.dot_dimension_numbers<[1], [1], [0], [0], [0, 0, 1, 0], [], []>} : vector<16x8xbf16>, vector<16x8xbf16>, vector<16x16xf32> -> vector<16x16xf32>
    %49 = arith.addf %48, %18 : vector<16x16xf32>
    %cst_22 = arith.constant dense<0xFF800000> : vector<16xf32>
    %50 = vector.multi_reduction <maximumf>, %49, %cst_22 [1] : vector<16x16xf32> to vector<16xf32>
    %51 = vector.shape_cast %50 : vector<16xf32> to vector<16x1xf32>
    %52 = vector.broadcast %51 : vector<16x1xf32> to vector<16x16xf32>
    %53 = arith.subf %49, %52 : vector<16x16xf32>
    %54 = math.exp %53 : vector<16x16xf32>
    %cst_23 = arith.constant dense<0.000000e+00> : vector<16xf32>
    %55 = vector.multi_reduction <add>, %54, %cst_23 [1] : vector<16x16xf32> to vector<16xf32>
    %56 = vector.shape_cast %55 : vector<16xf32> to vector<16x1xf32>
    %57 = tpu.reciprocal %56 {approx = true} : vector<16x1xf32> -> vector<16x1xf32>
    %58 = vector.broadcast %57 : vector<16x1xf32> to vector<16x16xf32>
    %59 = arith.mulf %54, %58 : vector<16x16xf32>
    %60 = arith.truncf %59 : vector<16x16xf32> to vector<16x16xbf16>
    %61 = arith.truncf %45 : vector<16x32xf32> to vector<16x32xbf16>
    %cst_24 = arith.constant dense<0.000000e+00> : vector<16x32xf32>
    %62 = tpu.matmul %60, %61, %cst_24 {dimension_numbers = #tpu.dot_dimension_numbers<[1], [0], [0], [1], [0, 0, 1, 1], [], []>} : vector<16x16xbf16>, vector<16x32xbf16>, vector<16x32xf32> -> vector<16x32xf32>
    %63 = arith.addf %30, %62 : vector<16x32xf32>
    %c32 = arith.constant 32 : index
    %c0_25 = arith.constant 0 : index
    %64 = vector.load %arg2[%c32, %c0_25] : memref<864x64xbf16, #tpu.memory_space<vmem>>, vector<32x8xbf16>
    %c160 = arith.constant 160 : index
    %c0_26 = arith.constant 0 : index
    %65 = vector.load %arg2[%c160, %c0_26] : memref<864x64xbf16, #tpu.memory_space<vmem>>, vector<32x8xbf16>
    %c288 = arith.constant 288 : index
    %c0_27 = arith.constant 0 : index
    %66 = vector.load %arg2[%c288, %c0_27] : memref<864x64xbf16, #tpu.memory_space<vmem>>, vector<32x32xbf16>
    %cst_28 = arith.constant dense<0.000000e+00> : vector<16x8xf32>
    %67 = tpu.matmul %29, %64, %cst_28 {dimension_numbers = #tpu.dot_dimension_numbers<[1], [0], [0], [1], [0, 0, 1, 1], [], []>} : vector<16x32xbf16>, vector<32x8xbf16>, vector<16x8xf32> -> vector<16x8xf32>
    %c1 = arith.constant 1 : index
    %c0_29 = arith.constant 0 : index
    %68 = vector.load %arg3[%c1, %c0_29] : memref<96x64xf32, #tpu.memory_space<vmem>>, vector<1x8xf32>
    %69 = vector.broadcast %68 : vector<1x8xf32> to vector<16x8xf32>
    %70 = arith.addf %67, %69 : vector<16x8xf32>
    %cst_30 = arith.constant dense<0.000000e+00> : vector<16x8xf32>
    %71 = tpu.matmul %29, %65, %cst_30 {dimension_numbers = #tpu.dot_dimension_numbers<[1], [0], [0], [1], [0, 0, 1, 1], [], []>} : vector<16x32xbf16>, vector<32x8xbf16>, vector<16x8xf32> -> vector<16x8xf32>
    %c9 = arith.constant 9 : index
    %c0_31 = arith.constant 0 : index
    %72 = vector.load %arg3[%c9, %c0_31] : memref<96x64xf32, #tpu.memory_space<vmem>>, vector<1x8xf32>
    %73 = vector.broadcast %72 : vector<1x8xf32> to vector<16x8xf32>
    %74 = arith.addf %71, %73 : vector<16x8xf32>
    %cst_32 = arith.constant dense<0.000000e+00> : vector<16x32xf32>
    %75 = tpu.matmul %29, %66, %cst_32 {dimension_numbers = #tpu.dot_dimension_numbers<[1], [0], [0], [1], [0, 0, 1, 1], [], []>} : vector<16x32xbf16>, vector<32x32xbf16>, vector<16x32xf32> -> vector<16x32xf32>
    %c17 = arith.constant 17 : index
    %c0_33 = arith.constant 0 : index
    %76 = vector.load %arg3[%c17, %c0_33] : memref<96x64xf32, #tpu.memory_space<vmem>>, vector<1x32xf32>
    %77 = vector.broadcast %76 : vector<1x32xf32> to vector<16x32xf32>
    %78 = arith.addf %75, %77 : vector<16x32xf32>
    %79 = arith.truncf %70 : vector<16x8xf32> to vector<16x8xbf16>
    %80 = arith.truncf %74 : vector<16x8xf32> to vector<16x8xbf16>
    %cst_34 = arith.constant dense<0.000000e+00> : vector<16x16xf32>
    %81 = tpu.matmul %79, %80, %cst_34 {dimension_numbers = #tpu.dot_dimension_numbers<[1], [1], [0], [0], [0, 0, 1, 0], [], []>} : vector<16x8xbf16>, vector<16x8xbf16>, vector<16x16xf32> -> vector<16x16xf32>
    %82 = arith.addf %81, %18 : vector<16x16xf32>
    %cst_35 = arith.constant dense<0xFF800000> : vector<16xf32>
    %83 = vector.multi_reduction <maximumf>, %82, %cst_35 [1] : vector<16x16xf32> to vector<16xf32>
    %84 = vector.shape_cast %83 : vector<16xf32> to vector<16x1xf32>
    %85 = vector.broadcast %84 : vector<16x1xf32> to vector<16x16xf32>
    %86 = arith.subf %82, %85 : vector<16x16xf32>
    %87 = math.exp %86 : vector<16x16xf32>
    %cst_36 = arith.constant dense<0.000000e+00> : vector<16xf32>
    %88 = vector.multi_reduction <add>, %87, %cst_36 [1] : vector<16x16xf32> to vector<16xf32>
    %89 = vector.shape_cast %88 : vector<16xf32> to vector<16x1xf32>
    %90 = tpu.reciprocal %89 {approx = true} : vector<16x1xf32> -> vector<16x1xf32>
    %91 = vector.broadcast %90 : vector<16x1xf32> to vector<16x16xf32>
    %92 = arith.mulf %87, %91 : vector<16x16xf32>
    %93 = arith.truncf %92 : vector<16x16xf32> to vector<16x16xbf16>
    %94 = arith.truncf %78 : vector<16x32xf32> to vector<16x32xbf16>
    %cst_37 = arith.constant dense<0.000000e+00> : vector<16x32xf32>
    %95 = tpu.matmul %93, %94, %cst_37 {dimension_numbers = #tpu.dot_dimension_numbers<[1], [0], [0], [1], [0, 0, 1, 1], [], []>} : vector<16x16xbf16>, vector<16x32xbf16>, vector<16x32xf32> -> vector<16x32xf32>
    %96 = arith.addf %63, %95 : vector<16x32xf32>
    %c64 = arith.constant 64 : index
    %c0_38 = arith.constant 0 : index
    %97 = vector.load %arg2[%c64, %c0_38] : memref<864x64xbf16, #tpu.memory_space<vmem>>, vector<32x8xbf16>
    %c192 = arith.constant 192 : index
    %c0_39 = arith.constant 0 : index
    %98 = vector.load %arg2[%c192, %c0_39] : memref<864x64xbf16, #tpu.memory_space<vmem>>, vector<32x8xbf16>
    %c320 = arith.constant 320 : index
    %c0_40 = arith.constant 0 : index
    %99 = vector.load %arg2[%c320, %c0_40] : memref<864x64xbf16, #tpu.memory_space<vmem>>, vector<32x32xbf16>
    %cst_41 = arith.constant dense<0.000000e+00> : vector<16x8xf32>
    %100 = tpu.matmul %29, %97, %cst_41 {dimension_numbers = #tpu.dot_dimension_numbers<[1], [0], [0], [1], [0, 0, 1, 1], [], []>} : vector<16x32xbf16>, vector<32x8xbf16>, vector<16x8xf32> -> vector<16x8xf32>
    %c2 = arith.constant 2 : index
    %c0_42 = arith.constant 0 : index
    %101 = vector.load %arg3[%c2, %c0_42] : memref<96x64xf32, #tpu.memory_space<vmem>>, vector<1x8xf32>
    %102 = vector.broadcast %101 : vector<1x8xf32> to vector<16x8xf32>
    %103 = arith.addf %100, %102 : vector<16x8xf32>
    %cst_43 = arith.constant dense<0.000000e+00> : vector<16x8xf32>
    %104 = tpu.matmul %29, %98, %cst_43 {dimension_numbers = #tpu.dot_dimension_numbers<[1], [0], [0], [1], [0, 0, 1, 1], [], []>} : vector<16x32xbf16>, vector<32x8xbf16>, vector<16x8xf32> -> vector<16x8xf32>
    %c10 = arith.constant 10 : index
    %c0_44 = arith.constant 0 : index
    %105 = vector.load %arg3[%c10, %c0_44] : memref<96x64xf32, #tpu.memory_space<vmem>>, vector<1x8xf32>
    %106 = vector.broadcast %105 : vector<1x8xf32> to vector<16x8xf32>
    %107 = arith.addf %104, %106 : vector<16x8xf32>
    %cst_45 = arith.constant dense<0.000000e+00> : vector<16x32xf32>
    %108 = tpu.matmul %29, %99, %cst_45 {dimension_numbers = #tpu.dot_dimension_numbers<[1], [0], [0], [1], [0, 0, 1, 1], [], []>} : vector<16x32xbf16>, vector<32x32xbf16>, vector<16x32xf32> -> vector<16x32xf32>
    %c18 = arith.constant 18 : index
    %c0_46 = arith.constant 0 : index
    %109 = vector.load %arg3[%c18, %c0_46] : memref<96x64xf32, #tpu.memory_space<vmem>>, vector<1x32xf32>
    %110 = vector.broadcast %109 : vector<1x32xf32> to vector<16x32xf32>
    %111 = arith.addf %108, %110 : vector<16x32xf32>
    %112 = arith.truncf %103 : vector<16x8xf32> to vector<16x8xbf16>
    %113 = arith.truncf %107 : vector<16x8xf32> to vector<16x8xbf16>
    %cst_47 = arith.constant dense<0.000000e+00> : vector<16x16xf32>
    %114 = tpu.matmul %112, %113, %cst_47 {dimension_numbers = #tpu.dot_dimension_numbers<[1], [1], [0], [0], [0, 0, 1, 0], [], []>} : vector<16x8xbf16>, vector<16x8xbf16>, vector<16x16xf32> -> vector<16x16xf32>
    %115 = arith.addf %114, %18 : vector<16x16xf32>
    %cst_48 = arith.constant dense<0xFF800000> : vector<16xf32>
    %116 = vector.multi_reduction <maximumf>, %115, %cst_48 [1] : vector<16x16xf32> to vector<16xf32>
    %117 = vector.shape_cast %116 : vector<16xf32> to vector<16x1xf32>
    %118 = vector.broadcast %117 : vector<16x1xf32> to vector<16x16xf32>
    %119 = arith.subf %115, %118 : vector<16x16xf32>
    %120 = math.exp %119 : vector<16x16xf32>
    %cst_49 = arith.constant dense<0.000000e+00> : vector<16xf32>
    %121 = vector.multi_reduction <add>, %120, %cst_49 [1] : vector<16x16xf32> to vector<16xf32>
    %122 = vector.shape_cast %121 : vector<16xf32> to vector<16x1xf32>
    %123 = tpu.reciprocal %122 {approx = true} : vector<16x1xf32> -> vector<16x1xf32>
    %124 = vector.broadcast %123 : vector<16x1xf32> to vector<16x16xf32>
    %125 = arith.mulf %120, %124 : vector<16x16xf32>
    %126 = arith.truncf %125 : vector<16x16xf32> to vector<16x16xbf16>
    %127 = arith.truncf %111 : vector<16x32xf32> to vector<16x32xbf16>
    %cst_50 = arith.constant dense<0.000000e+00> : vector<16x32xf32>
    %128 = tpu.matmul %126, %127, %cst_50 {dimension_numbers = #tpu.dot_dimension_numbers<[1], [0], [0], [1], [0, 0, 1, 1], [], []>} : vector<16x16xbf16>, vector<16x32xbf16>, vector<16x32xf32> -> vector<16x32xf32>
    %129 = arith.addf %96, %128 : vector<16x32xf32>
    %c96 = arith.constant 96 : index
    %c0_51 = arith.constant 0 : index
    %130 = vector.load %arg2[%c96, %c0_51] : memref<864x64xbf16, #tpu.memory_space<vmem>>, vector<32x8xbf16>
    %c224 = arith.constant 224 : index
    %c0_52 = arith.constant 0 : index
    %131 = vector.load %arg2[%c224, %c0_52] : memref<864x64xbf16, #tpu.memory_space<vmem>>, vector<32x8xbf16>
    %c352 = arith.constant 352 : index
    %c0_53 = arith.constant 0 : index
    %132 = vector.load %arg2[%c352, %c0_53] : memref<864x64xbf16, #tpu.memory_space<vmem>>, vector<32x32xbf16>
    %cst_54 = arith.constant dense<0.000000e+00> : vector<16x8xf32>
    %133 = tpu.matmul %29, %130, %cst_54 {dimension_numbers = #tpu.dot_dimension_numbers<[1], [0], [0], [1], [0, 0, 1, 1], [], []>} : vector<16x32xbf16>, vector<32x8xbf16>, vector<16x8xf32> -> vector<16x8xf32>
    %c3 = arith.constant 3 : index
    %c0_55 = arith.constant 0 : index
    %134 = vector.load %arg3[%c3, %c0_55] : memref<96x64xf32, #tpu.memory_space<vmem>>, vector<1x8xf32>
    %135 = vector.broadcast %134 : vector<1x8xf32> to vector<16x8xf32>
    %136 = arith.addf %133, %135 : vector<16x8xf32>
    %cst_56 = arith.constant dense<0.000000e+00> : vector<16x8xf32>
    %137 = tpu.matmul %29, %131, %cst_56 {dimension_numbers = #tpu.dot_dimension_numbers<[1], [0], [0], [1], [0, 0, 1, 1], [], []>} : vector<16x32xbf16>, vector<32x8xbf16>, vector<16x8xf32> -> vector<16x8xf32>
    %c11 = arith.constant 11 : index
    %c0_57 = arith.constant 0 : index
    %138 = vector.load %arg3[%c11, %c0_57] : memref<96x64xf32, #tpu.memory_space<vmem>>, vector<1x8xf32>
    %139 = vector.broadcast %138 : vector<1x8xf32> to vector<16x8xf32>
    %140 = arith.addf %137, %139 : vector<16x8xf32>
    %cst_58 = arith.constant dense<0.000000e+00> : vector<16x32xf32>
    %141 = tpu.matmul %29, %132, %cst_58 {dimension_numbers = #tpu.dot_dimension_numbers<[1], [0], [0], [1], [0, 0, 1, 1], [], []>} : vector<16x32xbf16>, vector<32x32xbf16>, vector<16x32xf32> -> vector<16x32xf32>
    %c19 = arith.constant 19 : index
    %c0_59 = arith.constant 0 : index
    %142 = vector.load %arg3[%c19, %c0_59] : memref<96x64xf32, #tpu.memory_space<vmem>>, vector<1x32xf32>
    %143 = vector.broadcast %142 : vector<1x32xf32> to vector<16x32xf32>
    %144 = arith.addf %141, %143 : vector<16x32xf32>
    %145 = arith.truncf %136 : vector<16x8xf32> to vector<16x8xbf16>
    %146 = arith.truncf %140 : vector<16x8xf32> to vector<16x8xbf16>
    %cst_60 = arith.constant dense<0.000000e+00> : vector<16x16xf32>
    %147 = tpu.matmul %145, %146, %cst_60 {dimension_numbers = #tpu.dot_dimension_numbers<[1], [1], [0], [0], [0, 0, 1, 0], [], []>} : vector<16x8xbf16>, vector<16x8xbf16>, vector<16x16xf32> -> vector<16x16xf32>
    %148 = arith.addf %147, %18 : vector<16x16xf32>
    %cst_61 = arith.constant dense<0xFF800000> : vector<16xf32>
    %149 = vector.multi_reduction <maximumf>, %148, %cst_61 [1] : vector<16x16xf32> to vector<16xf32>
    %150 = vector.shape_cast %149 : vector<16xf32> to vector<16x1xf32>
    %151 = vector.broadcast %150 : vector<16x1xf32> to vector<16x16xf32>
    %152 = arith.subf %148, %151 : vector<16x16xf32>
    %153 = math.exp %152 : vector<16x16xf32>
    %cst_62 = arith.constant dense<0.000000e+00> : vector<16xf32>
    %154 = vector.multi_reduction <add>, %153, %cst_62 [1] : vector<16x16xf32> to vector<16xf32>
    %155 = vector.shape_cast %154 : vector<16xf32> to vector<16x1xf32>
    %156 = tpu.reciprocal %155 {approx = true} : vector<16x1xf32> -> vector<16x1xf32>
    %157 = vector.broadcast %156 : vector<16x1xf32> to vector<16x16xf32>
    %158 = arith.mulf %153, %157 : vector<16x16xf32>
    %159 = arith.truncf %158 : vector<16x16xf32> to vector<16x16xbf16>
    %160 = arith.truncf %144 : vector<16x32xf32> to vector<16x32xbf16>
    %cst_63 = arith.constant dense<0.000000e+00> : vector<16x32xf32>
    %161 = tpu.matmul %159, %160, %cst_63 {dimension_numbers = #tpu.dot_dimension_numbers<[1], [0], [0], [1], [0, 0, 1, 1], [], []>} : vector<16x16xbf16>, vector<16x32xbf16>, vector<16x32xf32> -> vector<16x32xf32>
    %162 = arith.addf %129, %161 : vector<16x32xf32>
    %c24 = arith.constant 24 : index
    %c0_64 = arith.constant 0 : index
    %163 = vector.load %arg3[%c24, %c0_64] : memref<96x64xf32, #tpu.memory_space<vmem>>, vector<1x32xf32>
    %164 = vector.broadcast %163 : vector<1x32xf32> to vector<16x32xf32>
    %165 = arith.addf %162, %164 : vector<16x32xf32>
    %166 = arith.addf %0, %165 : vector<16x32xf32>
    %c80 = arith.constant 80 : index
    %c0_65 = arith.constant 0 : index
    %167 = vector.load %arg3[%c80, %c0_65] : memref<96x64xf32, #tpu.memory_space<vmem>>, vector<1x32xf32>
    %c88 = arith.constant 88 : index
    %c0_66 = arith.constant 0 : index
    %168 = vector.load %arg3[%c88, %c0_66] : memref<96x64xf32, #tpu.memory_space<vmem>>, vector<1x32xf32>
    %cst_67 = arith.constant dense<0.000000e+00> : vector<16xf32>
    %169 = vector.multi_reduction <add>, %166, %cst_67 [1] : vector<16x32xf32> to vector<16xf32>
    %170 = vector.shape_cast %169 : vector<16xf32> to vector<16x1xf32>
    %cst_68 = arith.constant 3.200000e+01 : f32
    %171 = vector.broadcast %cst_68 : f32 to vector<16x1xf32>
    %172 = arith.divf %170, %171 : vector<16x1xf32>
    %173 = vector.broadcast %172 : vector<16x1xf32> to vector<16x32xf32>
    %174 = arith.subf %166, %173 : vector<16x32xf32>
    %175 = arith.mulf %174, %174 : vector<16x32xf32>
    %cst_69 = arith.constant dense<0.000000e+00> : vector<16xf32>
    %176 = vector.multi_reduction <add>, %175, %cst_69 [1] : vector<16x32xf32> to vector<16xf32>
    %177 = vector.shape_cast %176 : vector<16xf32> to vector<16x1xf32>
    %cst_70 = arith.constant 3.200000e+01 : f32
    %178 = vector.broadcast %cst_70 : f32 to vector<16x1xf32>
    %179 = arith.divf %177, %178 : vector<16x1xf32>
    %cst_71 = arith.constant 9.99999974E-6 : f32
    %180 = vector.broadcast %cst_71 : f32 to vector<16x1xf32>
    %181 = arith.addf %179, %180 : vector<16x1xf32>
    %182 = math.rsqrt %181 : vector<16x1xf32>
    %183 = vector.broadcast %182 : vector<16x1xf32> to vector<16x32xf32>
    %184 = arith.mulf %174, %183 : vector<16x32xf32>
    %185 = vector.broadcast %167 : vector<1x32xf32> to vector<16x32xf32>
    %186 = arith.mulf %184, %185 : vector<16x32xf32>
    %187 = vector.broadcast %168 : vector<1x32xf32> to vector<16x32xf32>
    %188 = arith.addf %186, %187 : vector<16x32xf32>
    %189 = arith.truncf %188 : vector<16x32xf32> to vector<16x32xbf16>
    %cst_72 = arith.constant 0.000000e+00 : f32
    %190 = vector.broadcast %cst_72 : f32 to vector<16x32xf32>
    %c384 = arith.constant 384 : index
    %c0_73 = arith.constant 0 : index
    %191 = vector.load %arg2[%c384, %c0_73] : memref<864x64xbf16, #tpu.memory_space<vmem>>, vector<32x8xbf16>
    %c512 = arith.constant 512 : index
    %c0_74 = arith.constant 0 : index
    %192 = vector.load %arg2[%c512, %c0_74] : memref<864x64xbf16, #tpu.memory_space<vmem>>, vector<32x8xbf16>
    %c640 = arith.constant 640 : index
    %c0_75 = arith.constant 0 : index
    %193 = vector.load %arg2[%c640, %c0_75] : memref<864x64xbf16, #tpu.memory_space<vmem>>, vector<32x32xbf16>
    %cst_76 = arith.constant dense<0.000000e+00> : vector<16x8xf32>
    %194 = tpu.matmul %189, %191, %cst_76 {dimension_numbers = #tpu.dot_dimension_numbers<[1], [0], [0], [1], [0, 0, 1, 1], [], []>} : vector<16x32xbf16>, vector<32x8xbf16>, vector<16x8xf32> -> vector<16x8xf32>
    %c32_77 = arith.constant 32 : index
    %c0_78 = arith.constant 0 : index
    %195 = vector.load %arg3[%c32_77, %c0_78] : memref<96x64xf32, #tpu.memory_space<vmem>>, vector<1x8xf32>
    %196 = vector.broadcast %195 : vector<1x8xf32> to vector<16x8xf32>
    %197 = arith.addf %194, %196 : vector<16x8xf32>
    %cst_79 = arith.constant dense<0.000000e+00> : vector<32x8xf32>
    %198 = tpu.matmul %2, %192, %cst_79 {dimension_numbers = #tpu.dot_dimension_numbers<[1], [0], [0], [1], [0, 0, 1, 1], [], []>} : vector<32x32xbf16>, vector<32x8xbf16>, vector<32x8xf32> -> vector<32x8xf32>
    %c40 = arith.constant 40 : index
    %c0_80 = arith.constant 0 : index
    %199 = vector.load %arg3[%c40, %c0_80] : memref<96x64xf32, #tpu.memory_space<vmem>>, vector<1x8xf32>
    %200 = vector.broadcast %199 : vector<1x8xf32> to vector<32x8xf32>
    %201 = arith.addf %198, %200 : vector<32x8xf32>
    %cst_81 = arith.constant dense<0.000000e+00> : vector<32x32xf32>
    %202 = tpu.matmul %2, %193, %cst_81 {dimension_numbers = #tpu.dot_dimension_numbers<[1], [0], [0], [1], [0, 0, 1, 1], [], []>} : vector<32x32xbf16>, vector<32x32xbf16>, vector<32x32xf32> -> vector<32x32xf32>
    %c48 = arith.constant 48 : index
    %c0_82 = arith.constant 0 : index
    %203 = vector.load %arg3[%c48, %c0_82] : memref<96x64xf32, #tpu.memory_space<vmem>>, vector<1x32xf32>
    %204 = vector.broadcast %203 : vector<1x32xf32> to vector<32x32xf32>
    %205 = arith.addf %202, %204 : vector<32x32xf32>
    %206 = arith.truncf %197 : vector<16x8xf32> to vector<16x8xbf16>
    %207 = arith.truncf %201 : vector<32x8xf32> to vector<32x8xbf16>
    %cst_83 = arith.constant dense<0.000000e+00> : vector<16x32xf32>
    %208 = tpu.matmul %206, %207, %cst_83 {dimension_numbers = #tpu.dot_dimension_numbers<[1], [1], [0], [0], [0, 0, 1, 0], [], []>} : vector<16x8xbf16>, vector<32x8xbf16>, vector<16x32xf32> -> vector<16x32xf32>
    %209 = arith.addf %208, %28 : vector<16x32xf32>
    %cst_84 = arith.constant dense<0xFF800000> : vector<16xf32>
    %210 = vector.multi_reduction <maximumf>, %209, %cst_84 [1] : vector<16x32xf32> to vector<16xf32>
    %211 = vector.shape_cast %210 : vector<16xf32> to vector<16x1xf32>
    %212 = vector.broadcast %211 : vector<16x1xf32> to vector<16x32xf32>
    %213 = arith.subf %209, %212 : vector<16x32xf32>
    %214 = math.exp %213 : vector<16x32xf32>
    %cst_85 = arith.constant dense<0.000000e+00> : vector<16xf32>
    %215 = vector.multi_reduction <add>, %214, %cst_85 [1] : vector<16x32xf32> to vector<16xf32>
    %216 = vector.shape_cast %215 : vector<16xf32> to vector<16x1xf32>
    %217 = tpu.reciprocal %216 {approx = true} : vector<16x1xf32> -> vector<16x1xf32>
    %218 = vector.broadcast %217 : vector<16x1xf32> to vector<16x32xf32>
    %219 = arith.mulf %214, %218 : vector<16x32xf32>
    %220 = arith.truncf %219 : vector<16x32xf32> to vector<16x32xbf16>
    %221 = arith.truncf %205 : vector<32x32xf32> to vector<32x32xbf16>
    %cst_86 = arith.constant dense<0.000000e+00> : vector<16x32xf32>
    %222 = tpu.matmul %220, %221, %cst_86 {dimension_numbers = #tpu.dot_dimension_numbers<[1], [0], [0], [1], [0, 0, 1, 1], [], []>} : vector<16x32xbf16>, vector<32x32xbf16>, vector<16x32xf32> -> vector<16x32xf32>
    %223 = arith.addf %190, %222 : vector<16x32xf32>
    %c416 = arith.constant 416 : index
    %c0_87 = arith.constant 0 : index
    %224 = vector.load %arg2[%c416, %c0_87] : memref<864x64xbf16, #tpu.memory_space<vmem>>, vector<32x8xbf16>
    %c544 = arith.constant 544 : index
    %c0_88 = arith.constant 0 : index
    %225 = vector.load %arg2[%c544, %c0_88] : memref<864x64xbf16, #tpu.memory_space<vmem>>, vector<32x8xbf16>
    %c672 = arith.constant 672 : index
    %c0_89 = arith.constant 0 : index
    %226 = vector.load %arg2[%c672, %c0_89] : memref<864x64xbf16, #tpu.memory_space<vmem>>, vector<32x32xbf16>
    %cst_90 = arith.constant dense<0.000000e+00> : vector<16x8xf32>
    %227 = tpu.matmul %189, %224, %cst_90 {dimension_numbers = #tpu.dot_dimension_numbers<[1], [0], [0], [1], [0, 0, 1, 1], [], []>} : vector<16x32xbf16>, vector<32x8xbf16>, vector<16x8xf32> -> vector<16x8xf32>
    %c33 = arith.constant 33 : index
    %c0_91 = arith.constant 0 : index
    %228 = vector.load %arg3[%c33, %c0_91] : memref<96x64xf32, #tpu.memory_space<vmem>>, vector<1x8xf32>
    %229 = vector.broadcast %228 : vector<1x8xf32> to vector<16x8xf32>
    %230 = arith.addf %227, %229 : vector<16x8xf32>
    %cst_92 = arith.constant dense<0.000000e+00> : vector<32x8xf32>
    %231 = tpu.matmul %2, %225, %cst_92 {dimension_numbers = #tpu.dot_dimension_numbers<[1], [0], [0], [1], [0, 0, 1, 1], [], []>} : vector<32x32xbf16>, vector<32x8xbf16>, vector<32x8xf32> -> vector<32x8xf32>
    %c41 = arith.constant 41 : index
    %c0_93 = arith.constant 0 : index
    %232 = vector.load %arg3[%c41, %c0_93] : memref<96x64xf32, #tpu.memory_space<vmem>>, vector<1x8xf32>
    %233 = vector.broadcast %232 : vector<1x8xf32> to vector<32x8xf32>
    %234 = arith.addf %231, %233 : vector<32x8xf32>
    %cst_94 = arith.constant dense<0.000000e+00> : vector<32x32xf32>
    %235 = tpu.matmul %2, %226, %cst_94 {dimension_numbers = #tpu.dot_dimension_numbers<[1], [0], [0], [1], [0, 0, 1, 1], [], []>} : vector<32x32xbf16>, vector<32x32xbf16>, vector<32x32xf32> -> vector<32x32xf32>
    %c49 = arith.constant 49 : index
    %c0_95 = arith.constant 0 : index
    %236 = vector.load %arg3[%c49, %c0_95] : memref<96x64xf32, #tpu.memory_space<vmem>>, vector<1x32xf32>
    %237 = vector.broadcast %236 : vector<1x32xf32> to vector<32x32xf32>
    %238 = arith.addf %235, %237 : vector<32x32xf32>
    %239 = arith.truncf %230 : vector<16x8xf32> to vector<16x8xbf16>
    %240 = arith.truncf %234 : vector<32x8xf32> to vector<32x8xbf16>
    %cst_96 = arith.constant dense<0.000000e+00> : vector<16x32xf32>
    %241 = tpu.matmul %239, %240, %cst_96 {dimension_numbers = #tpu.dot_dimension_numbers<[1], [1], [0], [0], [0, 0, 1, 0], [], []>} : vector<16x8xbf16>, vector<32x8xbf16>, vector<16x32xf32> -> vector<16x32xf32>
    %242 = arith.addf %241, %28 : vector<16x32xf32>
    %cst_97 = arith.constant dense<0xFF800000> : vector<16xf32>
    %243 = vector.multi_reduction <maximumf>, %242, %cst_97 [1] : vector<16x32xf32> to vector<16xf32>
    %244 = vector.shape_cast %243 : vector<16xf32> to vector<16x1xf32>
    %245 = vector.broadcast %244 : vector<16x1xf32> to vector<16x32xf32>
    %246 = arith.subf %242, %245 : vector<16x32xf32>
    %247 = math.exp %246 : vector<16x32xf32>
    %cst_98 = arith.constant dense<0.000000e+00> : vector<16xf32>
    %248 = vector.multi_reduction <add>, %247, %cst_98 [1] : vector<16x32xf32> to vector<16xf32>
    %249 = vector.shape_cast %248 : vector<16xf32> to vector<16x1xf32>
    %250 = tpu.reciprocal %249 {approx = true} : vector<16x1xf32> -> vector<16x1xf32>
    %251 = vector.broadcast %250 : vector<16x1xf32> to vector<16x32xf32>
    %252 = arith.mulf %247, %251 : vector<16x32xf32>
    %253 = arith.truncf %252 : vector<16x32xf32> to vector<16x32xbf16>
    %254 = arith.truncf %238 : vector<32x32xf32> to vector<32x32xbf16>
    %cst_99 = arith.constant dense<0.000000e+00> : vector<16x32xf32>
    %255 = tpu.matmul %253, %254, %cst_99 {dimension_numbers = #tpu.dot_dimension_numbers<[1], [0], [0], [1], [0, 0, 1, 1], [], []>} : vector<16x32xbf16>, vector<32x32xbf16>, vector<16x32xf32> -> vector<16x32xf32>
    %256 = arith.addf %223, %255 : vector<16x32xf32>
    %c448 = arith.constant 448 : index
    %c0_100 = arith.constant 0 : index
    %257 = vector.load %arg2[%c448, %c0_100] : memref<864x64xbf16, #tpu.memory_space<vmem>>, vector<32x8xbf16>
    %c576 = arith.constant 576 : index
    %c0_101 = arith.constant 0 : index
    %258 = vector.load %arg2[%c576, %c0_101] : memref<864x64xbf16, #tpu.memory_space<vmem>>, vector<32x8xbf16>
    %c704 = arith.constant 704 : index
    %c0_102 = arith.constant 0 : index
    %259 = vector.load %arg2[%c704, %c0_102] : memref<864x64xbf16, #tpu.memory_space<vmem>>, vector<32x32xbf16>
    %cst_103 = arith.constant dense<0.000000e+00> : vector<16x8xf32>
    %260 = tpu.matmul %189, %257, %cst_103 {dimension_numbers = #tpu.dot_dimension_numbers<[1], [0], [0], [1], [0, 0, 1, 1], [], []>} : vector<16x32xbf16>, vector<32x8xbf16>, vector<16x8xf32> -> vector<16x8xf32>
    %c34 = arith.constant 34 : index
    %c0_104 = arith.constant 0 : index
    %261 = vector.load %arg3[%c34, %c0_104] : memref<96x64xf32, #tpu.memory_space<vmem>>, vector<1x8xf32>
    %262 = vector.broadcast %261 : vector<1x8xf32> to vector<16x8xf32>
    %263 = arith.addf %260, %262 : vector<16x8xf32>
    %cst_105 = arith.constant dense<0.000000e+00> : vector<32x8xf32>
    %264 = tpu.matmul %2, %258, %cst_105 {dimension_numbers = #tpu.dot_dimension_numbers<[1], [0], [0], [1], [0, 0, 1, 1], [], []>} : vector<32x32xbf16>, vector<32x8xbf16>, vector<32x8xf32> -> vector<32x8xf32>
    %c42 = arith.constant 42 : index
    %c0_106 = arith.constant 0 : index
    %265 = vector.load %arg3[%c42, %c0_106] : memref<96x64xf32, #tpu.memory_space<vmem>>, vector<1x8xf32>
    %266 = vector.broadcast %265 : vector<1x8xf32> to vector<32x8xf32>
    %267 = arith.addf %264, %266 : vector<32x8xf32>
    %cst_107 = arith.constant dense<0.000000e+00> : vector<32x32xf32>
    %268 = tpu.matmul %2, %259, %cst_107 {dimension_numbers = #tpu.dot_dimension_numbers<[1], [0], [0], [1], [0, 0, 1, 1], [], []>} : vector<32x32xbf16>, vector<32x32xbf16>, vector<32x32xf32> -> vector<32x32xf32>
    %c50 = arith.constant 50 : index
    %c0_108 = arith.constant 0 : index
    %269 = vector.load %arg3[%c50, %c0_108] : memref<96x64xf32, #tpu.memory_space<vmem>>, vector<1x32xf32>
    %270 = vector.broadcast %269 : vector<1x32xf32> to vector<32x32xf32>
    %271 = arith.addf %268, %270 : vector<32x32xf32>
    %272 = arith.truncf %263 : vector<16x8xf32> to vector<16x8xbf16>
    %273 = arith.truncf %267 : vector<32x8xf32> to vector<32x8xbf16>
    %cst_109 = arith.constant dense<0.000000e+00> : vector<16x32xf32>
    %274 = tpu.matmul %272, %273, %cst_109 {dimension_numbers = #tpu.dot_dimension_numbers<[1], [1], [0], [0], [0, 0, 1, 0], [], []>} : vector<16x8xbf16>, vector<32x8xbf16>, vector<16x32xf32> -> vector<16x32xf32>
    %275 = arith.addf %274, %28 : vector<16x32xf32>
    %cst_110 = arith.constant dense<0xFF800000> : vector<16xf32>
    %276 = vector.multi_reduction <maximumf>, %275, %cst_110 [1] : vector<16x32xf32> to vector<16xf32>
    %277 = vector.shape_cast %276 : vector<16xf32> to vector<16x1xf32>
    %278 = vector.broadcast %277 : vector<16x1xf32> to vector<16x32xf32>
    %279 = arith.subf %275, %278 : vector<16x32xf32>
    %280 = math.exp %279 : vector<16x32xf32>
    %cst_111 = arith.constant dense<0.000000e+00> : vector<16xf32>
    %281 = vector.multi_reduction <add>, %280, %cst_111 [1] : vector<16x32xf32> to vector<16xf32>
    %282 = vector.shape_cast %281 : vector<16xf32> to vector<16x1xf32>
    %283 = tpu.reciprocal %282 {approx = true} : vector<16x1xf32> -> vector<16x1xf32>
    %284 = vector.broadcast %283 : vector<16x1xf32> to vector<16x32xf32>
    %285 = arith.mulf %280, %284 : vector<16x32xf32>
    %286 = arith.truncf %285 : vector<16x32xf32> to vector<16x32xbf16>
    %287 = arith.truncf %271 : vector<32x32xf32> to vector<32x32xbf16>
    %cst_112 = arith.constant dense<0.000000e+00> : vector<16x32xf32>
    %288 = tpu.matmul %286, %287, %cst_112 {dimension_numbers = #tpu.dot_dimension_numbers<[1], [0], [0], [1], [0, 0, 1, 1], [], []>} : vector<16x32xbf16>, vector<32x32xbf16>, vector<16x32xf32> -> vector<16x32xf32>
    %289 = arith.addf %256, %288 : vector<16x32xf32>
    %c480 = arith.constant 480 : index
    %c0_113 = arith.constant 0 : index
    %290 = vector.load %arg2[%c480, %c0_113] : memref<864x64xbf16, #tpu.memory_space<vmem>>, vector<32x8xbf16>
    %c608 = arith.constant 608 : index
    %c0_114 = arith.constant 0 : index
    %291 = vector.load %arg2[%c608, %c0_114] : memref<864x64xbf16, #tpu.memory_space<vmem>>, vector<32x8xbf16>
    %c736 = arith.constant 736 : index
    %c0_115 = arith.constant 0 : index
    %292 = vector.load %arg2[%c736, %c0_115] : memref<864x64xbf16, #tpu.memory_space<vmem>>, vector<32x32xbf16>
    %cst_116 = arith.constant dense<0.000000e+00> : vector<16x8xf32>
    %293 = tpu.matmul %189, %290, %cst_116 {dimension_numbers = #tpu.dot_dimension_numbers<[1], [0], [0], [1], [0, 0, 1, 1], [], []>} : vector<16x32xbf16>, vector<32x8xbf16>, vector<16x8xf32> -> vector<16x8xf32>
    %c35 = arith.constant 35 : index
    %c0_117 = arith.constant 0 : index
    %294 = vector.load %arg3[%c35, %c0_117] : memref<96x64xf32, #tpu.memory_space<vmem>>, vector<1x8xf32>
    %295 = vector.broadcast %294 : vector<1x8xf32> to vector<16x8xf32>
    %296 = arith.addf %293, %295 : vector<16x8xf32>
    %cst_118 = arith.constant dense<0.000000e+00> : vector<32x8xf32>
    %297 = tpu.matmul %2, %291, %cst_118 {dimension_numbers = #tpu.dot_dimension_numbers<[1], [0], [0], [1], [0, 0, 1, 1], [], []>} : vector<32x32xbf16>, vector<32x8xbf16>, vector<32x8xf32> -> vector<32x8xf32>
    %c43 = arith.constant 43 : index
    %c0_119 = arith.constant 0 : index
    %298 = vector.load %arg3[%c43, %c0_119] : memref<96x64xf32, #tpu.memory_space<vmem>>, vector<1x8xf32>
    %299 = vector.broadcast %298 : vector<1x8xf32> to vector<32x8xf32>
    %300 = arith.addf %297, %299 : vector<32x8xf32>
    %cst_120 = arith.constant dense<0.000000e+00> : vector<32x32xf32>
    %301 = tpu.matmul %2, %292, %cst_120 {dimension_numbers = #tpu.dot_dimension_numbers<[1], [0], [0], [1], [0, 0, 1, 1], [], []>} : vector<32x32xbf16>, vector<32x32xbf16>, vector<32x32xf32> -> vector<32x32xf32>
    %c51 = arith.constant 51 : index
    %c0_121 = arith.constant 0 : index
    %302 = vector.load %arg3[%c51, %c0_121] : memref<96x64xf32, #tpu.memory_space<vmem>>, vector<1x32xf32>
    %303 = vector.broadcast %302 : vector<1x32xf32> to vector<32x32xf32>
    %304 = arith.addf %301, %303 : vector<32x32xf32>
    %305 = arith.truncf %296 : vector<16x8xf32> to vector<16x8xbf16>
    %306 = arith.truncf %300 : vector<32x8xf32> to vector<32x8xbf16>
    %cst_122 = arith.constant dense<0.000000e+00> : vector<16x32xf32>
    %307 = tpu.matmul %305, %306, %cst_122 {dimension_numbers = #tpu.dot_dimension_numbers<[1], [1], [0], [0], [0, 0, 1, 0], [], []>} : vector<16x8xbf16>, vector<32x8xbf16>, vector<16x32xf32> -> vector<16x32xf32>
    %308 = arith.addf %307, %28 : vector<16x32xf32>
    %cst_123 = arith.constant dense<0xFF800000> : vector<16xf32>
    %309 = vector.multi_reduction <maximumf>, %308, %cst_123 [1] : vector<16x32xf32> to vector<16xf32>
    %310 = vector.shape_cast %309 : vector<16xf32> to vector<16x1xf32>
    %311 = vector.broadcast %310 : vector<16x1xf32> to vector<16x32xf32>
    %312 = arith.subf %308, %311 : vector<16x32xf32>
    %313 = math.exp %312 : vector<16x32xf32>
    %cst_124 = arith.constant dense<0.000000e+00> : vector<16xf32>
    %314 = vector.multi_reduction <add>, %313, %cst_124 [1] : vector<16x32xf32> to vector<16xf32>
    %315 = vector.shape_cast %314 : vector<16xf32> to vector<16x1xf32>
    %316 = tpu.reciprocal %315 {approx = true} : vector<16x1xf32> -> vector<16x1xf32>
    %317 = vector.broadcast %316 : vector<16x1xf32> to vector<16x32xf32>
    %318 = arith.mulf %313, %317 : vector<16x32xf32>
    %319 = arith.truncf %318 : vector<16x32xf32> to vector<16x32xbf16>
    %320 = arith.truncf %304 : vector<32x32xf32> to vector<32x32xbf16>
    %cst_125 = arith.constant dense<0.000000e+00> : vector<16x32xf32>
    %321 = tpu.matmul %319, %320, %cst_125 {dimension_numbers = #tpu.dot_dimension_numbers<[1], [0], [0], [1], [0, 0, 1, 1], [], []>} : vector<16x32xbf16>, vector<32x32xbf16>, vector<16x32xf32> -> vector<16x32xf32>
    %322 = arith.addf %289, %321 : vector<16x32xf32>
    %c56 = arith.constant 56 : index
    %c0_126 = arith.constant 0 : index
    %323 = vector.load %arg3[%c56, %c0_126] : memref<96x64xf32, #tpu.memory_space<vmem>>, vector<1x32xf32>
    %324 = vector.broadcast %323 : vector<1x32xf32> to vector<16x32xf32>
    %325 = arith.addf %322, %324 : vector<16x32xf32>
    %326 = arith.addf %188, %325 : vector<16x32xf32>
    %c81 = arith.constant 81 : index
    %c0_127 = arith.constant 0 : index
    %327 = vector.load %arg3[%c81, %c0_127] : memref<96x64xf32, #tpu.memory_space<vmem>>, vector<1x32xf32>
    %c89 = arith.constant 89 : index
    %c0_128 = arith.constant 0 : index
    %328 = vector.load %arg3[%c89, %c0_128] : memref<96x64xf32, #tpu.memory_space<vmem>>, vector<1x32xf32>
    %cst_129 = arith.constant dense<0.000000e+00> : vector<16xf32>
    %329 = vector.multi_reduction <add>, %326, %cst_129 [1] : vector<16x32xf32> to vector<16xf32>
    %330 = vector.shape_cast %329 : vector<16xf32> to vector<16x1xf32>
    %cst_130 = arith.constant 3.200000e+01 : f32
    %331 = vector.broadcast %cst_130 : f32 to vector<16x1xf32>
    %332 = arith.divf %330, %331 : vector<16x1xf32>
    %333 = vector.broadcast %332 : vector<16x1xf32> to vector<16x32xf32>
    %334 = arith.subf %326, %333 : vector<16x32xf32>
    %335 = arith.mulf %334, %334 : vector<16x32xf32>
    %cst_131 = arith.constant dense<0.000000e+00> : vector<16xf32>
    %336 = vector.multi_reduction <add>, %335, %cst_131 [1] : vector<16x32xf32> to vector<16xf32>
    %337 = vector.shape_cast %336 : vector<16xf32> to vector<16x1xf32>
    %cst_132 = arith.constant 3.200000e+01 : f32
    %338 = vector.broadcast %cst_132 : f32 to vector<16x1xf32>
    %339 = arith.divf %337, %338 : vector<16x1xf32>
    %cst_133 = arith.constant 9.99999974E-6 : f32
    %340 = vector.broadcast %cst_133 : f32 to vector<16x1xf32>
    %341 = arith.addf %339, %340 : vector<16x1xf32>
    %342 = math.rsqrt %341 : vector<16x1xf32>
    %343 = vector.broadcast %342 : vector<16x1xf32> to vector<16x32xf32>
    %344 = arith.mulf %334, %343 : vector<16x32xf32>
    %345 = vector.broadcast %327 : vector<1x32xf32> to vector<16x32xf32>
    %346 = arith.mulf %344, %345 : vector<16x32xf32>
    %347 = vector.broadcast %328 : vector<1x32xf32> to vector<16x32xf32>
    %348 = arith.addf %346, %347 : vector<16x32xf32>
    %349 = arith.truncf %348 : vector<16x32xf32> to vector<16x32xbf16>
    %c768 = arith.constant 768 : index
    %c0_134 = arith.constant 0 : index
    %350 = vector.load %arg2[%c768, %c0_134] : memref<864x64xbf16, #tpu.memory_space<vmem>>, vector<32x64xbf16>
    %cst_135 = arith.constant dense<0.000000e+00> : vector<16x64xf32>
    %351 = tpu.matmul %349, %350, %cst_135 {dimension_numbers = #tpu.dot_dimension_numbers<[1], [0], [0], [1], [0, 0, 1, 1], [], []>} : vector<16x32xbf16>, vector<32x64xbf16>, vector<16x64xf32> -> vector<16x64xf32>
    %c64_136 = arith.constant 64 : index
    %c0_137 = arith.constant 0 : index
    %352 = vector.load %arg3[%c64_136, %c0_137] : memref<96x64xf32, #tpu.memory_space<vmem>>, vector<1x64xf32>
    %353 = vector.broadcast %352 : vector<1x64xf32> to vector<16x64xf32>
    %354 = arith.addf %351, %353 : vector<16x64xf32>
    %cst_138 = arith.constant 0.000000e+00 : f32
    %355 = vector.broadcast %cst_138 : f32 to vector<16x64xf32>
    %356 = arith.maximumf %354, %355 : vector<16x64xf32>
    %357 = arith.truncf %356 : vector<16x64xf32> to vector<16x64xbf16>
    %c800 = arith.constant 800 : index
    %c0_139 = arith.constant 0 : index
    %358 = vector.load %arg2[%c800, %c0_139] : memref<864x64xbf16, #tpu.memory_space<vmem>>, vector<64x32xbf16>
    %cst_140 = arith.constant dense<0.000000e+00> : vector<16x32xf32>
    %359 = tpu.matmul %357, %358, %cst_140 {dimension_numbers = #tpu.dot_dimension_numbers<[1], [0], [0], [1], [0, 0, 1, 1], [], []>} : vector<16x64xbf16>, vector<64x32xbf16>, vector<16x32xf32> -> vector<16x32xf32>
    %c72 = arith.constant 72 : index
    %c0_141 = arith.constant 0 : index
    %360 = vector.load %arg3[%c72, %c0_141] : memref<96x64xf32, #tpu.memory_space<vmem>>, vector<1x32xf32>
    %361 = vector.broadcast %360 : vector<1x32xf32> to vector<16x32xf32>
    %362 = arith.addf %359, %361 : vector<16x32xf32>
    %363 = arith.addf %348, %362 : vector<16x32xf32>
    %c82 = arith.constant 82 : index
    %c0_142 = arith.constant 0 : index
    %364 = vector.load %arg3[%c82, %c0_142] : memref<96x64xf32, #tpu.memory_space<vmem>>, vector<1x32xf32>
    %c90 = arith.constant 90 : index
    %c0_143 = arith.constant 0 : index
    %365 = vector.load %arg3[%c90, %c0_143] : memref<96x64xf32, #tpu.memory_space<vmem>>, vector<1x32xf32>
    %cst_144 = arith.constant dense<0.000000e+00> : vector<16xf32>
    %366 = vector.multi_reduction <add>, %363, %cst_144 [1] : vector<16x32xf32> to vector<16xf32>
    %367 = vector.shape_cast %366 : vector<16xf32> to vector<16x1xf32>
    %cst_145 = arith.constant 3.200000e+01 : f32
    %368 = vector.broadcast %cst_145 : f32 to vector<16x1xf32>
    %369 = arith.divf %367, %368 : vector<16x1xf32>
    %370 = vector.broadcast %369 : vector<16x1xf32> to vector<16x32xf32>
    %371 = arith.subf %363, %370 : vector<16x32xf32>
    %372 = arith.mulf %371, %371 : vector<16x32xf32>
    %cst_146 = arith.constant dense<0.000000e+00> : vector<16xf32>
    %373 = vector.multi_reduction <add>, %372, %cst_146 [1] : vector<16x32xf32> to vector<16xf32>
    %374 = vector.shape_cast %373 : vector<16xf32> to vector<16x1xf32>
    %cst_147 = arith.constant 3.200000e+01 : f32
    %375 = vector.broadcast %cst_147 : f32 to vector<16x1xf32>
    %376 = arith.divf %374, %375 : vector<16x1xf32>
    %cst_148 = arith.constant 9.99999974E-6 : f32
    %377 = vector.broadcast %cst_148 : f32 to vector<16x1xf32>
    %378 = arith.addf %376, %377 : vector<16x1xf32>
    %379 = math.rsqrt %378 : vector<16x1xf32>
    %380 = vector.broadcast %379 : vector<16x1xf32> to vector<16x32xf32>
    %381 = arith.mulf %371, %380 : vector<16x32xf32>
    %382 = vector.broadcast %364 : vector<1x32xf32> to vector<16x32xf32>
    %383 = arith.mulf %381, %382 : vector<16x32xf32>
    %384 = vector.broadcast %365 : vector<1x32xf32> to vector<16x32xf32>
    %385 = arith.addf %383, %384 : vector<16x32xf32>
    %c0_149 = arith.constant 0 : index
    %c0_150 = arith.constant 0 : index
    %386 = vector.load %arg4[%c0_149, %c0_150] : memref<16x32xf32, #tpu.memory_space<vmem>>, vector<16x32xf32>
    tpu.vector_store %arg4[%c0_149, %c0_150], %385 {strides = array<i32>} : memref<16x32xf32, #tpu.memory_space<vmem>>, vector<16x32xf32>,
    return
  }
}

</mosaic_0001>

<llo_original>
// kernel: tpu_custom_call.1
$region0: #{tpu_custom_call.1}
  #allocation0 [shape = 'u32[]', space=smem, size = 0x4, offset = 0x4, fixed_abs, tag = 'smem constant byte address 0x4 - core index']
  #allocation1 [shape = 'u32[72,128]{1,0:T(1,128)}', space=vmem, size = 0x9000, scoped, tag = 'internal scratch']
  %s0 = inlined_call_operand.vmem [shape: f32[16,32], index: 0, kind: input, shape index: {}]
  %s1 = inlined_call_operand.vmem [shape: f32[32,32], index: 1, kind: input, shape index: {}]
  %s2 = inlined_call_operand.vmem [shape: bf16[864,64], index: 2, kind: input, shape index: {}]
  %s3 = inlined_call_operand.vmem [shape: f32[96,64], index: 3, kind: input, shape index: {}]
  %s4 = inlined_call_operand.hbm [shape: f32[16,32], index: 4, kind: output, shape index: {}]
  %s5 = sld [smem:[#allocation0]]
  $region26: #{tpu_custom_call.1} parent=0
    _
  %s7 = ssub.s32 1, %s5
  %s8 = scalar_select 0, %s7, %s5
  $region1: #{tpu_custom_call.1} parent=0
    #allocation2 [shape = 'u8[8192]{0}', space=vmem, size = 0x2000, scoped, tag = 'output window, operand 0, single buffered']
    #allocation3 [shape = 's32[1]{0}', space=sflag, size = 0x4, scoped, tag = 'scoped memory for tpu_custom_call.1']
    %9 = vsyncpa [#allocation3], 0
    // Predicated region
    $region2: #{tpu_custom_call.1} parent=1 // pred_check
      _
    $region3: #{tpu_custom_call.1} parent=1 // pred_check_branch
      %11 = sbr.rel (0) target = $region5
    $region4: #{tpu_custom_call.1} parent=1 // pred_region
      _
    $region5: #{tpu_custom_call.1} parent=1 // pred_fallthru
      _
    // Predicated region
    $region6: #{tpu_custom_call.1} parent=1 // pred_check
      _
    $region7: #{tpu_custom_call.1} parent=1 // pred_check_branch
      %13 = sbr.rel (0) target = $region9
    $region8: #{tpu_custom_call.1} parent=1 // pred_region
      _
    $region9: #{tpu_custom_call.1} parent=1 // pred_fallthru
      _
    // Predicated region
    $region10: #{tpu_custom_call.1} parent=1 // pred_check
      _
    $region11: #{tpu_custom_call.1} parent=1 // pred_check_branch
      %15 = sbr.rel (0) target = $region13
    $region12: #{tpu_custom_call.1} parent=1 // pred_region
      _
    $region13: #{tpu_custom_call.1} parent=1 // pred_fallthru
      _
    // Predicated region
    $region14: #{tpu_custom_call.1} parent=1 // pred_check
      _
    $region15: #{tpu_custom_call.1} parent=1 // pred_check_branch
      %17 = sbr.rel (0) target = $region17
    $region16: #{tpu_custom_call.1} parent=1 // pred_region
      _
    $region17: #{tpu_custom_call.1} parent=1 // pred_fallthru
      _
    %v19 = vld [vmem:[%s0] sm:$0xff]
    %v20 = vld [vmem:[%s0 + $0x8] sm:$0xff]
    %v21 = vld [vmem:[%s1] sm:$0xff]
    %v22 = vld [vmem:[%s1 + $0x8] sm:$0xff]
    %v23 = vld [vmem:[%s1 + $0x10] sm:$0xff]
    %v24 = vld [vmem:[%s1 + $0x18] sm:$0xff]
    %v25 = vpack.c.bf16 %v22, %v21
    %v26 = vpack.c.bf16 %v24, %v23
    %v27 = vlaneseq
    %v28 = vshrl.u32 %v27, 7
    %v29 = vadd.s32 %v28, 8
    %v30 = vlaneseq
    %v31 = vand.u32 %v30, 127
    %v32 = vshra.s32 %v28, 3
    %v33 = vshra.s32 %v29, 3
    %v34 = vshra.s32 %v31, 3
    %vm35 = vcmp.eq.s32.totalorder %v32, %v34
    %vm36 = vcmp.eq.s32.totalorder %v33, %v34
    %v37 = vand.u32 %v31, 7
    %v38 = vand.u32 %v28, 7
    %v39 = vand.u32 %v29, 7
    %vm40 = vcmp.le.s32.totalorder %v37, %v38
    %vm41 = vcmp.le.s32.totalorder %v37, %v39
    %vm42 = vmand %vm35, %vm40
    %vm43 = vmand %vm36, %vm41
    %v44 = vsel %vm42, 0.0, -1e+09
    %v45 = vsel %vm43, 0.0, -1e+09
    %v46 = vshra.s32 %v31, 4
    %vm47 = vcmp.eq.s32.totalorder %v32, %v46
    %vm48 = vcmp.eq.s32.totalorder %v33, %v46
    %v49 = vsel %vm47, 0.0, -1e+09
    %v50 = vsel %vm48, 0.0, -1e+09
    %v51 = vpack.c.bf16 %v20, %v19
    %v52 = vld [vmem:[%s2] sm:$0xf]
    %v53 = vld [vmem:[%s2 + $0x4] sm:$0xf]
    %v54 = vld [vmem:[%s2 + $0x8] sm:$0xf]
    %v55 = vld [vmem:[%s2 + $0xc] sm:$0xf]
    %v56 = vld [vmem:[%s2 + $0x40] sm:$0xf]
    %v57 = vld [vmem:[%s2 + $0x44] sm:$0xf]
    %v58 = vld [vmem:[%s2 + $0x48] sm:$0xf]
    %v59 = vld [vmem:[%s2 + $0x4c] sm:$0xf]
    %v60 = vld [vmem:[%s2 + $0x80] sm:$0xf]
    %v61 = vld [vmem:[%s2 + $0x84] sm:$0xf]
    %v62 = vld [vmem:[%s2 + $0x88] sm:$0xf]
    %v63 = vld [vmem:[%s2 + $0x8c] sm:$0xf]
    %v64 = vld [vmem:[%s3] sm:$0x1]
    %v65 = vperm.slane %v64, 0
    %v70 = vunpack.c.l.b16 %v52
    %v71 = vunpack.c.l.b16 %v53
    %v72 = vunpack.c.l.b16 %v54
    %v73 = vunpack.c.l.b16 %v55
    %v74 = vpack.c.b16 %v71, %v70
    %v75 = vpack.c.b16 %v73, %v72
    %vm78 = vcmask 261120
    %v80 = vsel %vm78, %v51, 0
    %82 = vmatpush.bf16.msra.mxu0 0
    %83 = vmatpush.bf16.msra.mxu0 0
    %84 = vmatpush.bf16.msra.mxu0 0
    %85 = vmatpush.bf16.msra.mxu0 0
    %86 = vmatpush.bf16.msra.mxu0 0
    %87 = vmatpush.bf16.msra.mxu0 0
    %88 = vmatpush.bf16.msra.mxu0 %v75
    %89 = vmatpush.bf16.msra.mxu0 %v74
    %90 = vmatmul.bf16.gmra.mxu0 %v80
    %v91 = vpop.f32.mrf.mxu0
    %v92 = vadd.f32 %v65, %v91
    %v93 = vpop.f32.mrf.mxu0
    %v94 = vadd.f32 %v65, %v93
    %95 = vdwg.mxu0
    %v96 = vld [vmem:[%s3 + $0x8] sm:$0x1]
    %v97 = vperm.slane %v96, 0
    %v102 = vunpack.c.l.b16 %v56
    %v103 = vunpack.c.l.b16 %v57
    %v104 = vunpack.c.l.b16 %v58
    %v105 = vunpack.c.l.b16 %v59
    %v106 = vpack.c.b16 %v103, %v102
    %v107 = vpack.c.b16 %v105, %v104
    %110 = vmatpush.bf16.msra.mxu0 0
    %111 = vmatpush.bf16.msra.mxu0 0
    %112 = vmatpush.bf16.msra.mxu0 0
    %113 = vmatpush.bf16.msra.mxu0 0
    %114 = vmatpush.bf16.msra.mxu0 0
    %115 = vmatpush.bf16.msra.mxu0 0
    %116 = vmatpush.bf16.msra.mxu0 %v107
    %117 = vmatpush.bf16.msra.mxu0 %v106
    %118 = vmatmul.bf16.gmra.mxu0 %v80
    %v119 = vpop.f32.mrf.mxu0
    %v120 = vadd.f32 %v97, %v119
    %v121 = vpop.f32.mrf.mxu0
    %v122 = vadd.f32 %v97, %v121
    %123 = vdwg.mxu0
    %v124 = vld [vmem:[%s3 + $0x10] sm:$0x1]
    %v125 = vperm.slane %v124, 0
    %v130 = vunpack.c.l.b16 %v60
    %v131 = vunpack.c.l.b16 %v61
    %v132 = vunpack.c.l.b16 %v62
    %v133 = vunpack.c.l.b16 %v63
    %v134 = vpack.c.b16 %v131, %v130
    %v135 = vpack.c.b16 %v133, %v132
    %138 = vmatpush.bf16.msra.mxu0 0
    %139 = vmatpush.bf16.msra.mxu0 0
    %140 = vmatpush.bf16.msra.mxu0 0
    %141 = vmatpush.bf16.msra.mxu0 0
    %142 = vmatpush.bf16.msra.mxu0 0
    %143 = vmatpush.bf16.msra.mxu0 0
    %144 = vmatpush.bf16.msra.mxu0 %v135
    %145 = vmatpush.bf16.msra.mxu0 %v134
    %146 = vmatmul.bf16.gmra.mxu0 %v80
    %v147 = vpop.f32.mrf.mxu0
    %v148 = vadd.f32 %v125, %v147
    %v149 = vpop.f32.mrf.mxu0
    %v150 = vadd.f32 %v125, %v149
    %151 = vdwg.mxu0
    %v152 = vpack.c.bf16 %v94, %v92
    %v153 = vpack.c.bf16 %v122, %v120
    %vm154 = vcmask 64512
    %v156 = vsel %vm154, %v152, 0
    %v159 = vsel %vm154, %v153, 0
    %161 = vmatpush.bf16.xpose.msra.mxu0 0
    %162 = vmatpush.bf16.xpose.msra.mxu0 0
    %163 = vmatpush.bf16.xpose.msra.mxu0 0
    %164 = vmatpush.bf16.xpose.msra.mxu0 0
    %165 = vmatpush.bf16.xpose.msra.mxu0 0
    %166 = vmatpush.bf16.xpose.msra.mxu0 0
    %167 = vmatpush.bf16.xpose.msra.mxu0 0
    %168 = vmatpush.bf16.xpose.msra.mxu0 %v159
    %169 = vmatmul.bf16.gmra.mxu0 %v156
    %v170 = vpop.f32.mrf.mxu0
    %v171 = vadd.f32 %v44, %v170
    %v172 = vpop.f32.mrf.mxu0
    %v173 = vadd.f32 %v45, %v172
    %174 = vdwg.mxu0
    %vm175 = vcmask 130048
    %v176 = vsel %vm175, %v171, -inf
    %177 = vmax.xlane.f32.xlu0 %v176
    %v178 = vpop.xlane.xlu0 %177
    %v179 = vsel %vm175, %v173, -inf
    %180 = vmax.xlane.f32.xlu0 %v179
    %v181 = vpop.xlane.xlu0 %180
    %v182 = vsub.f32 %v171, %v178
    %v183 = vsub.f32 %v173, %v181
    %v184 = vmul.f32 %v182, 1.442695
    %v185 = vpow.pop %v184
    %v186 = vmul.f32 %v183, 1.442695
    %v187 = vpow.pop %v186
    %v188 = vsel %vm175, %v185, 0.0
    %189 = vadd.xlane.f32.xlu0 %v188
    %v190 = vpop.xlane.xlu0 %189
    %v191 = vsel %vm175, %v187, 0.0
    %192 = vadd.xlane.f32.xlu0 %v191
    %v193 = vpop.xlane.xlu0 %192
    %v194 = vrcp.pop %v190
    %v195 = vrcp.pop %v193
    %v196 = vmul.f32 %v185, %v194
    %v197 = vmul.f32 %v187, %v195
    %v198 = vpack.c.bf16 %v197, %v196
    %v199 = vpack.c.bf16 %v150, %v148
    %v200 = vld [vmem:[%s2 + $0x10] sm:$0xf]
    %v201 = vld [vmem:[%s2 + $0x14] sm:$0xf]
    %v202 = vld [vmem:[%s2 + $0x18] sm:$0xf]
    %v203 = vld [vmem:[%s2 + $0x1c] sm:$0xf]
    %v204 = vld [vmem:[%s2 + $0x50] sm:$0xf]
    %v205 = vld [vmem:[%s2 + $0x54] sm:$0xf]
    %v206 = vld [vmem:[%s2 + $0x58] sm:$0xf]
    %v207 = vld [vmem:[%s2 + $0x5c] sm:$0xf]
    %v208 = vld [vmem:[%s2 + $0x90] sm:$0xf]
    %v209 = vld [vmem:[%s2 + $0x94] sm:$0xf]
    %v210 = vld [vmem:[%s2 + $0x98] sm:$0xf]
    %v211 = vld [vmem:[%s2 + $0x9c] sm:$0xf]
    %v212 = vld [vmem:[%s3 + $0x1] sm:$0x1]
    %v213 = vperm.slane %v212, 0
    %v218 = vunpack.c.l.b16 %v200
    %v219 = vunpack.c.l.b16 %v201
    %v220 = vunpack.c.l.b16 %v202
    %v221 = vunpack.c.l.b16 %v203
    %v222 = vpack.c.b16 %v219, %v218
    %v223 = vpack.c.b16 %v221, %v220
    %226 = vmatpush.bf16.msra.mxu0 0
    %227 = vmatpush.bf16.msra.mxu0 0
    %228 = vmatpush.bf16.msra.mxu0 0
    %229 = vmatpush.bf16.msra.mxu0 0
    %230 = vmatpush.bf16.msra.mxu0 0
    %231 = vmatpush.bf16.msra.mxu0 0
    %232 = vmatpush.bf16.msra.mxu0 %v223
    %233 = vmatpush.bf16.msra.mxu0 %v222
    %234 = vmatmul.bf16.gmra.mxu0 %v80
    %v235 = vpop.f32.mrf.mxu0
    %v236 = vadd.f32 %v213, %v235
    %v237 = vpop.f32.mrf.mxu0
    %v238 = vadd.f32 %v213, %v237
    %239 = vdwg.mxu0
    %v240 = vld [vmem:[%s3 + $0x9] sm:$0x1]
    %v241 = vperm.slane %v240, 0
    %v246 = vunpack.c.l.b16 %v204
    %v247 = vunpack.c.l.b16 %v205
    %v248 = vunpack.c.l.b16 %v206
    %v249 = vunpack.c.l.b16 %v207
    %v250 = vpack.c.b16 %v247, %v246
    %v251 = vpack.c.b16 %v249, %v248
    %254 = vmatpush.bf16.msra.mxu0 0
    %255 = vmatpush.bf16.msra.mxu0 0
    %256 = vmatpush.bf16.msra.mxu0 0
    %257 = vmatpush.bf16.msra.mxu0 0
    %258 = vmatpush.bf16.msra.mxu0 0
    %259 = vmatpush.bf16.msra.mxu0 0
    %260 = vmatpush.bf16.msra.mxu0 %v251
    %261 = vmatpush.bf16.msra.mxu0 %v250
    %262 = vmatmul.bf16.gmra.mxu0 %v80
    %v263 = vpop.f32.mrf.mxu0
    %v264 = vadd.f32 %v241, %v263
    %v265 = vpop.f32.mrf.mxu0
    %v266 = vadd.f32 %v241, %v265
    %267 = vdwg.mxu0
    %v268 = vld [vmem:[%s3 + $0x11] sm:$0x1]
    %v269 = vperm.slane %v268, 0
    %v274 = vunpack.c.l.b16 %v208
    %v275 = vunpack.c.l.b16 %v209
    %v276 = vunpack.c.l.b16 %v210
    %v277 = vunpack.c.l.b16 %v211
    %v278 = vpack.c.b16 %v275, %v274
    %v279 = vpack.c.b16 %v277, %v276
    %282 = vmatpush.bf16.msra.mxu0 0
    %283 = vmatpush.bf16.msra.mxu0 0
    %284 = vmatpush.bf16.msra.mxu0 0
    %285 = vmatpush.bf16.msra.mxu0 0
    %286 = vmatpush.bf16.msra.mxu0 0
    %287 = vmatpush.bf16.msra.mxu0 0
    %288 = vmatpush.bf16.msra.mxu0 %v279
    %289 = vmatpush.bf16.msra.mxu0 %v278
    %290 = vmatmul.bf16.gmra.mxu0 %v80
    %v291 = vpop.f32.mrf.mxu0
    %v292 = vadd.f32 %v269, %v291
    %v293 = vpop.f32.mrf.mxu0
    %v294 = vadd.f32 %v269, %v293
    %295 = vdwg.mxu0
    %v296 = vpack.c.bf16 %v238, %v236
    %v297 = vpack.c.bf16 %v266, %v264
    %v299 = vsel %vm154, %v296, 0
    %v302 = vsel %vm154, %v297, 0
    %304 = vmatpush.bf16.xpose.msra.mxu0 0
    %305 = vmatpush.bf16.xpose.msra.mxu0 0
    %306 = vmatpush.bf16.xpose.msra.mxu0 0
    %307 = vmatpush.bf16.xpose.msra.mxu0 0
    %308 = vmatpush.bf16.xpose.msra.mxu0 0
    %309 = vmatpush.bf16.xpose.msra.mxu0 0
    %310 = vmatpush.bf16.xpose.msra.mxu0 0
    %311 = vmatpush.bf16.xpose.msra.mxu0 %v302
    %312 = vmatmul.bf16.gmra.mxu0 %v299
    %v313 = vpop.f32.mrf.mxu0
    %v314 = vadd.f32 %v44, %v313
    %v315 = vpop.f32.mrf.mxu0
    %v316 = vadd.f32 %v45, %v315
    %317 = vdwg.mxu0
    %v318 = vsel %vm175, %v314, -inf
    %319 = vmax.xlane.f32.xlu0 %v318
    %v320 = vpop.xlane.xlu0 %319
    %v321 = vsel %vm175, %v316, -inf
    %322 = vmax.xlane.f32.xlu0 %v321
    %v323 = vpop.xlane.xlu0 %322
    %v324 = vsub.f32 %v314, %v320
    %v325 = vsub.f32 %v316, %v323
    %v326 = vmul.f32 %v324, 1.442695
    %v327 = vpow.pop %v326
    %v328 = vmul.f32 %v325, 1.442695
    %v329 = vpow.pop %v328
    %v330 = vsel %vm175, %v327, 0.0
    %331 = vadd.xlane.f32.xlu0 %v330
    %v332 = vpop.xlane.xlu0 %331
    %v333 = vsel %vm175, %v329, 0.0
    %334 = vadd.xlane.f32.xlu0 %v333
    %v335 = vpop.xlane.xlu0 %334
    %v336 = vrcp.pop %v332
    %v337 = vrcp.pop %v335
    %v338 = vmul.f32 %v327, %v336
    %v339 = vmul.f32 %v329, %v337
    %v340 = vpack.c.bf16 %v339, %v338
    %v341 = vpack.c.bf16 %v294, %v292
    %v343 = vsel %vm175, %v340, 0
    %345 = vmatpush.bf16.msra.mxu0 0
    %346 = vmatpush.bf16.msra.mxu0 0
    %347 = vmatpush.bf16.msra.mxu0 0
    %348 = vmatpush.bf16.msra.mxu0 0
    %349 = vmatpush.bf16.msra.mxu0 0
    %350 = vmatpush.bf16.msra.mxu0 0
    %351 = vmatpush.bf16.msra.mxu0 0
    %352 = vmatpush.bf16.msra.mxu0 %v341
    %353 = vmatmul.bf16.gmra.mxu0 %v343
    %v354 = vpop.f32.mrf.mxu0
    %v355 = vadd.f32 0.0, %v354
    %v356 = vpop.f32.mrf.mxu0
    %v357 = vadd.f32 0.0, %v356
    %358 = vdwg.mxu0
    %v360 = vsel %vm175, %v198, 0
    %362 = vmatpush.bf16.msra.mxu0 0
    %363 = vmatpush.bf16.msra.mxu0 0
    %364 = vmatpush.bf16.msra.mxu0 0
    %365 = vmatpush.bf16.msra.mxu0 0
    %366 = vmatpush.bf16.msra.mxu0 0
    %367 = vmatpush.bf16.msra.mxu0 0
    %368 = vmatpush.bf16.msra.mxu0 0
    %369 = vmatpush.bf16.msra.mxu0 %v199
    %370 = vmatmul.bf16.gmra.mxu0 %v360
    %v371 = vpop.f32.mrf.mxu0
    %v372 = vadd.f32 %v355, %v371
    %v373 = vpop.f32.mrf.mxu0
    %v374 = vadd.f32 %v357, %v373
    %375 = vdwg.mxu0
    %v376 = vld [vmem:[%s2 + $0x20] sm:$0xf]
    %v377 = vld [vmem:[%s2 + $0x24] sm:$0xf]
    %v378 = vld [vmem:[%s2 + $0x28] sm:$0xf]
    %v379 = vld [vmem:[%s2 + $0x2c] sm:$0xf]
    %v380 = vld [vmem:[%s2 + $0x60] sm:$0xf]
    %v381 = vld [vmem:[%s2 + $0x64] sm:$0xf]
    %v382 = vld [vmem:[%s2 + $0x68] sm:$0xf]
    %v383 = vld [vmem:[%s2 + $0x6c] sm:$0xf]
    %v384 = vld [vmem:[%s2 + $0xa0] sm:$0xf]
    %v385 = vld [vmem:[%s2 + $0xa4] sm:$0xf]
    %v386 = vld [vmem:[%s2 + $0xa8] sm:$0xf]
    %v387 = vld [vmem:[%s2 + $0xac] sm:$0xf]
    %v388 = vld [vmem:[%s3 + $0x2] sm:$0x1]
    %v389 = vperm.slane %v388, 0
    %v394 = vunpack.c.l.b16 %v376
    %v395 = vunpack.c.l.b16 %v377
    %v396 = vunpack.c.l.b16 %v378
    %v397 = vunpack.c.l.b16 %v379
    %v398 = vpack.c.b16 %v395, %v394
    %v399 = vpack.c.b16 %v397, %v396
    %402 = vmatpush.bf16.msra.mxu0 0
    %403 = vmatpush.bf16.msra.mxu0 0
    %404 = vmatpush.bf16.msra.mxu0 0
    %405 = vmatpush.bf16.msra.mxu0 0
    %406 = vmatpush.bf16.msra.mxu0 0
    %407 = vmatpush.bf16.msra.mxu0 0
    %408 = vmatpush.bf16.msra.mxu0 %v399
    %409 = vmatpush.bf16.msra.mxu0 %v398
    %410 = vmatmul.bf16.gmra.mxu0 %v80
    %v411 = vpop.f32.mrf.mxu0
    %v412 = vadd.f32 %v389, %v411
    %v413 = vpop.f32.mrf.mxu0
    %v414 = vadd.f32 %v389, %v413
    %415 = vdwg.mxu0
    %v416 = vld [vmem:[%s3 + $0xa] sm:$0x1]
    %v417 = vperm.slane %v416, 0
    %v422 = vunpack.c.l.b16 %v380
    %v423 = vunpack.c.l.b16 %v381
    %v424 = vunpack.c.l.b16 %v382
    %v425 = vunpack.c.l.b16 %v383
    %v426 = vpack.c.b16 %v423, %v422
    %v427 = vpack.c.b16 %v425, %v424
    %430 = vmatpush.bf16.msra.mxu0 0
    %431 = vmatpush.bf16.msra.mxu0 0
    %432 = vmatpush.bf16.msra.mxu0 0
    %433 = vmatpush.bf16.msra.mxu0 0
    %434 = vmatpush.bf16.msra.mxu0 0
    %435 = vmatpush.bf16.msra.mxu0 0
    %436 = vmatpush.bf16.msra.mxu0 %v427
    %437 = vmatpush.bf16.msra.mxu0 %v426
    %438 = vmatmul.bf16.gmra.mxu0 %v80
    %v439 = vpop.f32.mrf.mxu0
    %v440 = vadd.f32 %v417, %v439
    %v441 = vpop.f32.mrf.mxu0
    %v442 = vadd.f32 %v417, %v441
    %443 = vdwg.mxu0
    %v444 = vld [vmem:[%s3 + $0x12] sm:$0x1]
    %v445 = vperm.slane %v444, 0
    %v450 = vunpack.c.l.b16 %v384
    %v451 = vunpack.c.l.b16 %v385
    %v452 = vunpack.c.l.b16 %v386
    %v453 = vunpack.c.l.b16 %v387
    %v454 = vpack.c.b16 %v451, %v450
    %v455 = vpack.c.b16 %v453, %v452
    %458 = vmatpush.bf16.msra.mxu0 0
    %459 = vmatpush.bf16.msra.mxu0 0
    %460 = vmatpush.bf16.msra.mxu0 0
    %461 = vmatpush.bf16.msra.mxu0 0
    %462 = vmatpush.bf16.msra.mxu0 0
    %463 = vmatpush.bf16.msra.mxu0 0
    %464 = vmatpush.bf16.msra.mxu0 %v455
    %465 = vmatpush.bf16.msra.mxu0 %v454
    %466 = vmatmul.bf16.gmra.mxu0 %v80
    %v467 = vpop.f32.mrf.mxu0
    %v468 = vadd.f32 %v445, %v467
    %v469 = vpop.f32.mrf.mxu0
    %v470 = vadd.f32 %v445, %v469
    %471 = vdwg.mxu0
    %v472 = vpack.c.bf16 %v414, %v412
    %v473 = vpack.c.bf16 %v442, %v440
    %v475 = vsel %vm154, %v472, 0
    %v478 = vsel %vm154, %v473, 0
    %480 = vmatpush.bf16.xpose.msra.mxu0 0
    %481 = vmatpush.bf16.xpose.msra.mxu0 0
    %482 = vmatpush.bf16.xpose.msra.mxu0 0
    %483 = vmatpush.bf16.xpose.msra.mxu0 0
    %484 = vmatpush.bf16.xpose.msra.mxu0 0
    %485 = vmatpush.bf16.xpose.msra.mxu0 0
    %486 = vmatpush.bf16.xpose.msra.mxu0 0
    %487 = vmatpush.bf16.xpose.msra.mxu0 %v478
    %488 = vmatmul.bf16.gmra.mxu0 %v475
    %v489 = vpop.f32.mrf.mxu0
    %v490 = vadd.f32 %v44, %v489
    %v491 = vpop.f32.mrf.mxu0
    %v492 = vadd.f32 %v45, %v491
    %493 = vdwg.mxu0
    %v494 = vsel %vm175, %v490, -inf
    %495 = vmax.xlane.f32.xlu0 %v494
    %v496 = vpop.xlane.xlu0 %495
    %v497 = vsel %vm175, %v492, -inf
    %498 = vmax.xlane.f32.xlu0 %v497
    %v499 = vpop.xlane.xlu0 %498
    %v500 = vsub.f32 %v490, %v496
    %v501 = vsub.f32 %v492, %v499
    %v502 = vmul.f32 %v500, 1.442695
    %v503 = vpow.pop %v502
    %v504 = vmul.f32 %v501, 1.442695
    %v505 = vpow.pop %v504
    %v506 = vsel %vm175, %v503, 0.0
    %507 = vadd.xlane.f32.xlu0 %v506
    %v508 = vpop.xlane.xlu0 %507
    %v509 = vsel %vm175, %v505, 0.0
    %510 = vadd.xlane.f32.xlu0 %v509
    %v511 = vpop.xlane.xlu0 %510
    %v512 = vrcp.pop %v508
    %v513 = vrcp.pop %v511
    %v514 = vmul.f32 %v503, %v512
    %v515 = vmul.f32 %v505, %v513
    %v516 = vpack.c.bf16 %v515, %v514
    %v517 = vpack.c.bf16 %v470, %v468
    %v519 = vsel %vm175, %v516, 0
    %521 = vmatpush.bf16.msra.mxu0 0
    %522 = vmatpush.bf16.msra.mxu0 0
    %523 = vmatpush.bf16.msra.mxu0 0
    %524 = vmatpush.bf16.msra.mxu0 0
    %525 = vmatpush.bf16.msra.mxu0 0
    %526 = vmatpush.bf16.msra.mxu0 0
    %527 = vmatpush.bf16.msra.mxu0 0
    %528 = vmatpush.bf16.msra.mxu0 %v517
    %529 = vmatmul.bf16.gmra.mxu0 %v519
    %v530 = vpop.f32.mrf.mxu0
    %v531 = vadd.f32 0.0, %v530
    %v532 = vpop.f32.mrf.mxu0
    %v533 = vadd.f32 0.0, %v532
    %534 = vdwg.mxu0
    %v535 = vadd.f32 %v372, %v531
    %v536 = vadd.f32 %v374, %v533
    %v537 = vld [vmem:[%s2 + $0x30] sm:$0xf]
    %v538 = vld [vmem:[%s2 + $0x34] sm:$0xf]
    %v539 = vld [vmem:[%s2 + $0x38] sm:$0xf]
    %v540 = vld [vmem:[%s2 + $0x3c] sm:$0xf]
    %v541 = vld [vmem:[%s2 + $0x70] sm:$0xf]
    %v542 = vld [vmem:[%s2 + $0x74] sm:$0xf]
    %v543 = vld [vmem:[%s2 + $0x78] sm:$0xf]
    %v544 = vld [vmem:[%s2 + $0x7c] sm:$0xf]
    %v545 = vld [vmem:[%s2 + $0xb0] sm:$0xf]
    %v546 = vld [vmem:[%s2 + $0xb4] sm:$0xf]
    %v547 = vld [vmem:[%s2 + $0xb8] sm:$0xf]
    %v548 = vld [vmem:[%s2 + $0xbc] sm:$0xf]
    %v549 = vld [vmem:[%s3 + $0x3] sm:$0x1]
    %v550 = vperm.slane %v549, 0
    %v555 = vunpack.c.l.b16 %v537
    %v556 = vunpack.c.l.b16 %v538
    %v557 = vunpack.c.l.b16 %v539
    %v558 = vunpack.c.l.b16 %v540
    %v559 = vpack.c.b16 %v556, %v555
    %v560 = vpack.c.b16 %v558, %v557
    %563 = vmatpush.bf16.msra.mxu0 0
    %564 = vmatpush.bf16.msra.mxu0 0
    %565 = vmatpush.bf16.msra.mxu0 0
    %566 = vmatpush.bf16.msra.mxu0 0
    %567 = vmatpush.bf16.msra.mxu0 0
    %568 = vmatpush.bf16.msra.mxu0 0
    %569 = vmatpush.bf16.msra.mxu0 %v560
    %570 = vmatpush.bf16.msra.mxu0 %v559
    %571 = vmatmul.bf16.gmra.mxu0 %v80
    %v572 = vpop.f32.mrf.mxu0
    %v573 = vadd.f32 %v550, %v572
    %v574 = vpop.f32.mrf.mxu0
    %v575 = vadd.f32 %v550, %v574
    %576 = vdwg.mxu0
    %v577 = vld [vmem:[%s3 + $0xb] sm:$0x1]
    %v578 = vperm.slane %v577, 0
    %v583 = vunpack.c.l.b16 %v541
    %v584 = vunpack.c.l.b16 %v542
    %v585 = vunpack.c.l.b16 %v543
    %v586 = vunpack.c.l.b16 %v544
    %v587 = vpack.c.b16 %v584, %v583
    %v588 = vpack.c.b16 %v586, %v585
    %591 = vmatpush.bf16.msra.mxu0 0
    %592 = vmatpush.bf16.msra.mxu0 0
    %593 = vmatpush.bf16.msra.mxu0 0
    %594 = vmatpush.bf16.msra.mxu0 0
    %595 = vmatpush.bf16.msra.mxu0 0
    %596 = vmatpush.bf16.msra.mxu0 0
    %597 = vmatpush.bf16.msra.mxu0 %v588
    %598 = vmatpush.bf16.msra.mxu0 %v587
    %599 = vmatmul.bf16.gmra.mxu0 %v80
    %v600 = vpop.f32.mrf.mxu0
    %v601 = vadd.f32 %v578, %v600
    %v602 = vpop.f32.mrf.mxu0
    %v603 = vadd.f32 %v578, %v602
    %604 = vdwg.mxu0
    %v605 = vld [vmem:[%s3 + $0x13] sm:$0x1]
    %v606 = vperm.slane %v605, 0
    %v611 = vunpack.c.l.b16 %v545
    %v612 = vunpack.c.l.b16 %v546
    %v613 = vunpack.c.l.b16 %v547
    %v614 = vunpack.c.l.b16 %v548
    %v615 = vpack.c.b16 %v612, %v611
    %v616 = vpack.c.b16 %v614, %v613
    %619 = vmatpush.bf16.msra.mxu0 0
    %620 = vmatpush.bf16.msra.mxu0 0
    %621 = vmatpush.bf16.msra.mxu0 0
    %622 = vmatpush.bf16.msra.mxu0 0
    %623 = vmatpush.bf16.msra.mxu0 0
    %624 = vmatpush.bf16.msra.mxu0 0
    %625 = vmatpush.bf16.msra.mxu0 %v616
    %626 = vmatpush.bf16.msra.mxu0 %v615
    %627 = vmatmul.bf16.gmra.mxu0 %v80
    %v628 = vpop.f32.mrf.mxu0
    %v629 = vadd.f32 %v606, %v628
    %v630 = vpop.f32.mrf.mxu0
    %v631 = vadd.f32 %v606, %v630
    %632 = vdwg.mxu0
    %v633 = vpack.c.bf16 %v575, %v573
    %v634 = vpack.c.bf16 %v603, %v601
    %v636 = vsel %vm154, %v633, 0
    %v639 = vsel %vm154, %v634, 0
    %641 = vmatpush.bf16.xpose.msra.mxu0 0
    %642 = vmatpush.bf16.xpose.msra.mxu0 0
    %643 = vmatpush.bf16.xpose.msra.mxu0 0
    %644 = vmatpush.bf16.xpose.msra.mxu0 0
    %645 = vmatpush.bf16.xpose.msra.mxu0 0
    %646 = vmatpush.bf16.xpose.msra.mxu0 0
    %647 = vmatpush.bf16.xpose.msra.mxu0 0
    %648 = vmatpush.bf16.xpose.msra.mxu0 %v639
    %649 = vmatmul.bf16.gmra.mxu0 %v636
    %v650 = vpop.f32.mrf.mxu0
    %v651 = vadd.f32 %v44, %v650
    %v652 = vpop.f32.mrf.mxu0
    %v653 = vadd.f32 %v45, %v652
    %654 = vdwg.mxu0
    %v655 = vsel %vm175, %v651, -inf
    %656 = vmax.xlane.f32.xlu0 %v655
    %v657 = vpop.xlane.xlu0 %656
    %v658 = vsel %vm175, %v653, -inf
    %659 = vmax.xlane.f32.xlu0 %v658
    %v660 = vpop.xlane.xlu0 %659
    %v661 = vsub.f32 %v651, %v657
    %v662 = vsub.f32 %v653, %v660
    %v663 = vmul.f32 %v661, 1.442695
    %v664 = vpow.pop %v663
    %v665 = vmul.f32 %v662, 1.442695
    %v666 = vpow.pop %v665
    %v667 = vsel %vm175, %v664, 0.0
    %668 = vadd.xlane.f32.xlu0 %v667
    %v669 = vpop.xlane.xlu0 %668
    %v670 = vsel %vm175, %v666, 0.0
    %671 = vadd.xlane.f32.xlu0 %v670
    %v672 = vpop.xlane.xlu0 %671
    %v673 = vrcp.pop %v669
    %v674 = vrcp.pop %v672
    %v675 = vmul.f32 %v664, %v673
    %v676 = vmul.f32 %v666, %v674
    %v677 = vpack.c.bf16 %v676, %v675
    %v678 = vpack.c.bf16 %v631, %v629
    %v680 = vsel %vm175, %v677, 0
    %682 = vmatpush.bf16.msra.mxu0 0
    %683 = vmatpush.bf16.msra.mxu0 0
    %684 = vmatpush.bf16.msra.mxu0 0
    %685 = vmatpush.bf16.msra.mxu0 0
    %686 = vmatpush.bf16.msra.mxu0 0
    %687 = vmatpush.bf16.msra.mxu0 0
    %688 = vmatpush.bf16.msra.mxu0 0
    %689 = vmatpush.bf16.msra.mxu0 %v678
    %690 = vmatmul.bf16.gmra.mxu0 %v680
    %v691 = vpop.f32.mrf.mxu0
    %v692 = vadd.f32 0.0, %v691
    %v693 = vpop.f32.mrf.mxu0
    %v694 = vadd.f32 0.0, %v693
    %695 = vdwg.mxu0
    %v696 = vadd.f32 %v535, %v692
    %v697 = vadd.f32 %v536, %v694
    %v698 = vld [vmem:[%s3 + $0x18] sm:$0x1]
    %v699 = vperm.slane %v698, 0
    %v700 = vadd.f32 %v696, %v699
    %v701 = vadd.f32 %v697, %v699
    %v702 = vadd.f32 %v19, %v700
    %v703 = vadd.f32 %v20, %v701
    %v704 = vld [vmem:[%s3 + $0x50] sm:$0x1]
    %v705 = vld [vmem:[%s3 + $0x58] sm:$0x1]
    %v706 = vsel %vm78, %v702, 0.0
    %707 = vadd.xlane.f32.xlu0 %v706
    %v708 = vpop.xlane.xlu0 %707
    %v709 = vsel %vm78, %v703, 0.0
    %710 = vadd.xlane.f32.xlu0 %v709
    %v711 = vpop.xlane.xlu0 %710
    %v712 = vrcp.pop 32.0
    %v713 = vmul.f32 32.0, %v712
    %v714 = vsub.f32 1.0, %v713
    %v715 = vmul.f32 %v712, %v714
    %v716 = vadd.f32 %v712, %v715
    %vm717 = vweird.f32 %v712
    %v718 = vsel %vm717, %v712, %v716
    %v719 = vmul.f32 %v708, %v718
    %v720 = vmul.f32 %v711, %v718
    %v721 = vsub.f32 %v702, %v719
    %v722 = vsub.f32 %v703, %v720
    %v723 = vmul.f32 %v721, %v721
    %v724 = vmul.f32 %v722, %v722
    %v725 = vsel %vm78, %v723, 0.0
    %726 = vadd.xlane.f32.xlu0 %v725
    %v727 = vpop.xlane.xlu0 %726
    %v728 = vsel %vm78, %v724, 0.0
    %729 = vadd.xlane.f32.xlu0 %v728
    %v730 = vpop.xlane.xlu0 %729
    %v731 = vmul.f32 %v727, %v718
    %v732 = vmul.f32 %v730, %v718
    %v733 = vadd.f32 %v731, 1e-05
    %v734 = vadd.f32 %v732, 1e-05
    %v735 = vrsqrt.pop %v733
    %v736 = vmul.f32 %v735, %v733
    %v737 = vmul.f32 %v736, %v735
    %v738 = vmul.f32 0.5, %v737
    %v739 = vsub.f32 1.5, %v738
    %v740 = vmul.f32 %v735, %v739
    %vm741 = vweird.f32 %v733
    %vm742 = vweird.f32 %v735
    %vm743 = vmor %vm741, %vm742
    %v744 = vsel %vm743, %v735, %v740
    %v745 = vrsqrt.pop %v734
    %v746 = vmul.f32 %v745, %v734
    %v747 = vmul.f32 %v746, %v745
    %v748 = vmul.f32 0.5, %v747
    %v749 = vsub.f32 1.5, %v748
    %v750 = vmul.f32 %v745, %v749
    %vm751 = vweird.f32 %v734
    %vm752 = vweird.f32 %v745
    %vm753 = vmor %vm751, %vm752
    %v754 = vsel %vm753, %v745, %v750
    %v755 = vmul.f32 %v721, %v744
    %v756 = vmul.f32 %v722, %v754
    %v757 = vperm.slane %v704, 0
    %v758 = vmul.f32 %v755, %v757
    %v759 = vmul.f32 %v756, %v757
    %v760 = vperm.slane %v705, 0
    %v761 = vadd.f32 %v758, %v760
    %v762 = vadd.f32 %v759, %v760
    %v763 = vpack.c.bf16 %v762, %v761
    %v764 = vld [vmem:[%s2 + $0xc0] sm:$0xf]
    %v765 = vld [vmem:[%s2 + $0xc4] sm:$0xf]
    %v766 = vld [vmem:[%s2 + $0xc8] sm:$0xf]
    %v767 = vld [vmem:[%s2 + $0xcc] sm:$0xf]
    %v768 = vld [vmem:[%s2 + $0x100] sm:$0xf]
    %v769 = vld [vmem:[%s2 + $0x104] sm:$0xf]
    %v770 = vld [vmem:[%s2 + $0x108] sm:$0xf]
    %v771 = vld [vmem:[%s2 + $0x10c] sm:$0xf]
    %v772 = vld [vmem:[%s2 + $0x140] sm:$0xf]
    %v773 = vld [vmem:[%s2 + $0x144] sm:$0xf]
    %v774 = vld [vmem:[%s2 + $0x148] sm:$0xf]
    %v775 = vld [vmem:[%s2 + $0x14c] sm:$0xf]
    %v776 = vld [vmem:[%s3 + $0x20] sm:$0x1]
    %v777 = vperm.slane %v776, 0
    %v782 = vunpack.c.l.b16 %v764
    %v783 = vunpack.c.l.b16 %v765
    %v784 = vunpack.c.l.b16 %v766
    %v785 = vunpack.c.l.b16 %v767
    %v786 = vpack.c.b16 %v783, %v782
    %v787 = vpack.c.b16 %v785, %v784
    %v791 = vsel %vm78, %v763, 0
    %793 = vmatpush.bf16.msra.mxu0 0
    %794 = vmatpush.bf16.msra.mxu0 0
    %795 = vmatpush.bf16.msra.mxu0 0
    %796 = vmatpush.bf16.msra.mxu0 0
    %797 = vmatpush.bf16.msra.mxu0 0
    %798 = vmatpush.bf16.msra.mxu0 0
    %799 = vmatpush.bf16.msra.mxu0 %v787
    %800 = vmatpush.bf16.msra.mxu0 %v786
    %801 = vmatmul.bf16.gmra.mxu0 %v791
    %v802 = vpop.f32.mrf.mxu0
    %v803 = vadd.f32 %v777, %v802
    %v804 = vpop.f32.mrf.mxu0
    %v805 = vadd.f32 %v777, %v804
    %806 = vdwg.mxu0
    %v807 = vld [vmem:[%s3 + $0x28] sm:$0x1]
    %v808 = vperm.slane %v807, 0
    %v813 = vunpack.c.l.b16 %v768
    %v814 = vunpack.c.l.b16 %v769
    %v815 = vunpack.c.l.b16 %v770
    %v816 = vunpack.c.l.b16 %v771
    %v817 = vpack.c.b16 %v814, %v813
    %v818 = vpack.c.b16 %v816, %v815
    %v822 = vsel %vm78, %v25, 0
    %v825 = vsel %vm78, %v26, 0
    %827 = vmatpush.bf16.msra.mxu0 0
    %828 = vmatpush.bf16.msra.mxu0 0
    %829 = vmatpush.bf16.msra.mxu0 0
    %830 = vmatpush.bf16.msra.mxu0 0
    %831 = vmatpush.bf16.msra.mxu0 0
    %832 = vmatpush.bf16.msra.mxu0 0
    %833 = vmatpush.bf16.msra.mxu0 %v818
    %834 = vmatpush.bf16.msra.mxu0 %v817
    %835 = vmatmul.bf16.gmra.mxu0 %v822
    %v836 = vpop.f32.mrf.mxu0
    %v837 = vadd.f32 %v808, %v836
    %v838 = vpop.f32.mrf.mxu0
    %v839 = vadd.f32 %v808, %v838
    %840 = vmatmul.bf16.gmra.mxu0 %v825
    %v841 = vpop.f32.mrf.mxu0
    %v842 = vadd.f32 %v808, %v841
    %v843 = vpop.f32.mrf.mxu0
    %v844 = vadd.f32 %v808, %v843
    %845 = vdwg.mxu0
    %v846 = vld [vmem:[%s3 + $0x30] sm:$0x1]
    %v847 = vperm.slane %v846, 0
    %v852 = vunpack.c.l.b16 %v772
    %v853 = vunpack.c.l.b16 %v773
    %v854 = vunpack.c.l.b16 %v774
    %v855 = vunpack.c.l.b16 %v775
    %v856 = vpack.c.b16 %v853, %v852
    %v857 = vpack.c.b16 %v855, %v854
    %860 = vmatpush.bf16.msra.mxu0 0
    %861 = vmatpush.bf16.msra.mxu0 0
    %862 = vmatpush.bf16.msra.mxu0 0
    %863 = vmatpush.bf16.msra.mxu0 0
    %864 = vmatpush.bf16.msra.mxu0 0
    %865 = vmatpush.bf16.msra.mxu0 0
    %866 = vmatpush.bf16.msra.mxu0 %v857
    %867 = vmatpush.bf16.msra.mxu0 %v856
    %868 = vmatmul.bf16.gmra.mxu0 %v822
    %v869 = vpop.f32.mrf.mxu0
    %v870 = vadd.f32 %v847, %v869
    %v871 = vpop.f32.mrf.mxu0
    %v872 = vadd.f32 %v847, %v871
    %873 = vmatmul.bf16.gmra.mxu0 %v825
    %v874 = vpop.f32.mrf.mxu0
    %v875 = vadd.f32 %v847, %v874
    %v876 = vpop.f32.mrf.mxu0
    %v877 = vadd.f32 %v847, %v876
    %878 = vdwg.mxu0
    %v879 = vpack.c.bf16 %v805, %v803
    %v880 = vpack.c.bf16 %v839, %v837
    %v881 = vpack.c.bf16 %v844, %v842
    %v883 = vsel %vm154, %v879, 0
    %v886 = vsel %vm154, %v880, 0
    %v889 = vsel %vm154, %v881, 0
    %891 = vmatpush.bf16.xpose.msra.mxu0 0
    %892 = vmatpush.bf16.xpose.msra.mxu0 0
    %893 = vmatpush.bf16.xpose.msra.mxu0 0
    %894 = vmatpush.bf16.xpose.msra.mxu0 0
    %895 = vmatpush.bf16.xpose.msra.mxu0 0
    %896 = vmatpush.bf16.xpose.msra.mxu0 0
    %897 = vmatpush.bf16.xpose.msra.mxu0 %v889
    %898 = vmatpush.bf16.xpose.msra.mxu0 %v886
    %899 = vmatmul.bf16.gmra.mxu0 %v883
    %v900 = vpop.f32.mrf.mxu0
    %v901 = vadd.f32 %v49, %v900
    %v902 = vpop.f32.mrf.mxu0
    %v903 = vadd.f32 %v50, %v902
    %904 = vdwg.mxu0
    %v905 = vsel %vm78, %v901, -inf
    %906 = vmax.xlane.f32.xlu0 %v905
    %v907 = vpop.xlane.xlu0 %906
    %v908 = vsel %vm78, %v903, -inf
    %909 = vmax.xlane.f32.xlu0 %v908
    %v910 = vpop.xlane.xlu0 %909
    %v911 = vsub.f32 %v901, %v907
    %v912 = vsub.f32 %v903, %v910
    %v913 = vmul.f32 %v911, 1.442695
    %v914 = vpow.pop %v913
    %v915 = vmul.f32 %v912, 1.442695
    %v916 = vpow.pop %v915
    %v917 = vsel %vm78, %v914, 0.0
    %918 = vadd.xlane.f32.xlu0 %v917
    %v919 = vpop.xlane.xlu0 %918
    %v920 = vsel %vm78, %v916, 0.0
    %921 = vadd.xlane.f32.xlu0 %v920
    %v922 = vpop.xlane.xlu0 %921
    %v923 = vrcp.pop %v919
    %v924 = vrcp.pop %v922
    %v925 = vmul.f32 %v914, %v923
    %v926 = vmul.f32 %v916, %v924
    %v927 = vpack.c.bf16 %v926, %v925
    %v928 = vpack.c.bf16 %v872, %v870
    %v929 = vpack.c.bf16 %v877, %v875
    %v930 = vld [vmem:[%s2 + $0xd0] sm:$0xf]
    %v931 = vld [vmem:[%s2 + $0xd4] sm:$0xf]
    %v932 = vld [vmem:[%s2 + $0xd8] sm:$0xf]
    %v933 = vld [vmem:[%s2 + $0xdc] sm:$0xf]
    %v934 = vld [vmem:[%s2 + $0x110] sm:$0xf]
    %v935 = vld [vmem:[%s2 + $0x114] sm:$0xf]
    %v936 = vld [vmem:[%s2 + $0x118] sm:$0xf]
    %v937 = vld [vmem:[%s2 + $0x11c] sm:$0xf]
    %v938 = vld [vmem:[%s2 + $0x150] sm:$0xf]
    %v939 = vld [vmem:[%s2 + $0x154] sm:$0xf]
    %v940 = vld [vmem:[%s2 + $0x158] sm:$0xf]
    %v941 = vld [vmem:[%s2 + $0x15c] sm:$0xf]
    %v942 = vld [vmem:[%s3 + $0x21] sm:$0x1]
    %v943 = vperm.slane %v942, 0
    %v948 = vunpack.c.l.b16 %v930
    %v949 = vunpack.c.l.b16 %v931
    %v950 = vunpack.c.l.b16 %v932
    %v951 = vunpack.c.l.b16 %v933
    %v952 = vpack.c.b16 %v949, %v948
    %v953 = vpack.c.b16 %v951, %v950
    %956 = vmatpush.bf16.msra.mxu0 0
    %957 = vmatpush.bf16.msra.mxu0 0
    %958 = vmatpush.bf16.msra.mxu0 0
    %959 = vmatpush.bf16.msra.mxu0 0
    %960 = vmatpush.bf16.msra.mxu0 0
    %961 = vmatpush.bf16.msra.mxu0 0
    %962 = vmatpush.bf16.msra.mxu0 %v953
    %963 = vmatpush.bf16.msra.mxu0 %v952
    %964 = vmatmul.bf16.gmra.mxu0 %v791
    %v965 = vpop.f32.mrf.mxu0
    %v966 = vadd.f32 %v943, %v965
    %v967 = vpop.f32.mrf.mxu0
    %v968 = vadd.f32 %v943, %v967
    %969 = vdwg.mxu0
    %v970 = vld [vmem:[%s3 + $0x29] sm:$0x1]
    %v971 = vperm.slane %v970, 0
    %v976 = vunpack.c.l.b16 %v934
    %v977 = vunpack.c.l.b16 %v935
    %v978 = vunpack.c.l.b16 %v936
    %v979 = vunpack.c.l.b16 %v937
    %v980 = vpack.c.b16 %v977, %v976
    %v981 = vpack.c.b16 %v979, %v978
    %984 = vmatpush.bf16.msra.mxu0 0
    %985 = vmatpush.bf16.msra.mxu0 0
    %986 = vmatpush.bf16.msra.mxu0 0
    %987 = vmatpush.bf16.msra.mxu0 0
    %988 = vmatpush.bf16.msra.mxu0 0
    %989 = vmatpush.bf16.msra.mxu0 0
    %990 = vmatpush.bf16.msra.mxu0 %v981
    %991 = vmatpush.bf16.msra.mxu0 %v980
    %992 = vmatmul.bf16.gmra.mxu0 %v822
    %v993 = vpop.f32.mrf.mxu0
    %v994 = vadd.f32 %v971, %v993
    %v995 = vpop.f32.mrf.mxu0
    %v996 = vadd.f32 %v971, %v995
    %997 = vmatmul.bf16.gmra.mxu0 %v825
    %v998 = vpop.f32.mrf.mxu0
    %v999 = vadd.f32 %v971, %v998
    %v1000 = vpop.f32.mrf.mxu0
    %v1001 = vadd.f32 %v971, %v1000
    %1002 = vdwg.mxu0
    %v1003 = vld [vmem:[%s3 + $0x31] sm:$0x1]
    %v1004 = vperm.slane %v1003, 0
    %v1009 = vunpack.c.l.b16 %v938
    %v1010 = vunpack.c.l.b16 %v939
    %v1011 = vunpack.c.l.b16 %v940
    %v1012 = vunpack.c.l.b16 %v941
    %v1013 = vpack.c.b16 %v1010, %v1009
    %v1014 = vpack.c.b16 %v1012, %v1011
    %1017 = vmatpush.bf16.msra.mxu0 0
    %1018 = vmatpush.bf16.msra.mxu0 0
    %1019 = vmatpush.bf16.msra.mxu0 0
    %1020 = vmatpush.bf16.msra.mxu0 0
    %1021 = vmatpush.bf16.msra.mxu0 0
    %1022 = vmatpush.bf16.msra.mxu0 0
    %1023 = vmatpush.bf16.msra.mxu0 %v1014
    %1024 = vmatpush.bf16.msra.mxu0 %v1013
    %1025 = vmatmul.bf16.gmra.mxu0 %v822
    %v1026 = vpop.f32.mrf.mxu0
    %v1027 = vadd.f32 %v1004, %v1026
    %v1028 = vpop.f32.mrf.mxu0
    %v1029 = vadd.f32 %v1004, %v1028
    %1030 = vmatmul.bf16.gmra.mxu0 %v825
    %v1031 = vpop.f32.mrf.mxu0
    %v1032 = vadd.f32 %v1004, %v1031
    %v1033 = vpop.f32.mrf.mxu0
    %v1034 = vadd.f32 %v1004, %v1033
    %1035 = vdwg.mxu0
    %v1036 = vpack.c.bf16 %v968, %v966
    %v1037 = vpack.c.bf16 %v996, %v994
    %v1038 = vpack.c.bf16 %v1001, %v999
    %v1040 = vsel %vm154, %v1036, 0
    %v1043 = vsel %vm154, %v1037, 0
    %v1046 = vsel %vm154, %v1038, 0
    %1048 = vmatpush.bf16.xpose.msra.mxu0 0
    %1049 = vmatpush.bf16.xpose.msra.mxu0 0
    %1050 = vmatpush.bf16.xpose.msra.mxu0 0
    %1051 = vmatpush.bf16.xpose.msra.mxu0 0
    %1052 = vmatpush.bf16.xpose.msra.mxu0 0
    %1053 = vmatpush.bf16.xpose.msra.mxu0 0
    %1054 = vmatpush.bf16.xpose.msra.mxu0 %v1046
    %1055 = vmatpush.bf16.xpose.msra.mxu0 %v1043
    %1056 = vmatmul.bf16.gmra.mxu0 %v1040
    %v1057 = vpop.f32.mrf.mxu0
    %v1058 = vadd.f32 %v49, %v1057
    %v1059 = vpop.f32.mrf.mxu0
    %v1060 = vadd.f32 %v50, %v1059
    %1061 = vdwg.mxu0
    %v1062 = vsel %vm78, %v1058, -inf
    %1063 = vmax.xlane.f32.xlu0 %v1062
    %v1064 = vpop.xlane.xlu0 %1063
    %v1065 = vsel %vm78, %v1060, -inf
    %1066 = vmax.xlane.f32.xlu0 %v1065
    %v1067 = vpop.xlane.xlu0 %1066
    %v1068 = vsub.f32 %v1058, %v1064
    %v1069 = vsub.f32 %v1060, %v1067
    %v1070 = vmul.f32 %v1068, 1.442695
    %v1071 = vpow.pop %v1070
    %v1072 = vmul.f32 %v1069, 1.442695
    %v1073 = vpow.pop %v1072
    %v1074 = vsel %vm78, %v1071, 0.0
    %1075 = vadd.xlane.f32.xlu0 %v1074
    %v1076 = vpop.xlane.xlu0 %1075
    %v1077 = vsel %vm78, %v1073, 0.0
    %1078 = vadd.xlane.f32.xlu0 %v1077
    %v1079 = vpop.xlane.xlu0 %1078
    %v1080 = vrcp.pop %v1076
    %v1081 = vrcp.pop %v1079
    %v1082 = vmul.f32 %v1071, %v1080
    %v1083 = vmul.f32 %v1073, %v1081
    %v1084 = vpack.c.bf16 %v1083, %v1082
    %v1085 = vpack.c.bf16 %v1029, %v1027
    %v1086 = vpack.c.bf16 %v1034, %v1032
    %v1088 = vsel %vm78, %v1084, 0
    %1090 = vmatpush.bf16.msra.mxu0 0
    %1091 = vmatpush.bf16.msra.mxu0 0
    %1092 = vmatpush.bf16.msra.mxu0 0
    %1093 = vmatpush.bf16.msra.mxu0 0
    %1094 = vmatpush.bf16.msra.mxu0 0
    %1095 = vmatpush.bf16.msra.mxu0 0
    %1096 = vmatpush.bf16.msra.mxu0 %v1086
    %1097 = vmatpush.bf16.msra.mxu0 %v1085
    %1098 = vmatmul.bf16.gmra.mxu0 %v1088
    %v1099 = vpop.f32.mrf.mxu0
    %v1100 = vadd.f32 0.0, %v1099
    %v1101 = vpop.f32.mrf.mxu0
    %v1102 = vadd.f32 0.0, %v1101
    %1103 = vdwg.mxu0
    %v1105 = vsel %vm78, %v927, 0
    %1107 = vmatpush.bf16.msra.mxu0 0
    %1108 = vmatpush.bf16.msra.mxu0 0
    %1109 = vmatpush.bf16.msra.mxu0 0
    %1110 = vmatpush.bf16.msra.mxu0 0
    %1111 = vmatpush.bf16.msra.mxu0 0
    %1112 = vmatpush.bf16.msra.mxu0 0
    %1113 = vmatpush.bf16.msra.mxu0 %v929
    %1114 = vmatpush.bf16.msra.mxu0 %v928
    %1115 = vmatmul.bf16.gmra.mxu0 %v1105
    %v1116 = vpop.f32.mrf.mxu0
    %v1117 = vadd.f32 %v1100, %v1116
    %v1118 = vpop.f32.mrf.mxu0
    %v1119 = vadd.f32 %v1102, %v1118
    %1120 = vdwg.mxu0
    %v1121 = vld [vmem:[%s2 + $0xe0] sm:$0xf]
    %v1122 = vld [vmem:[%s2 + $0xe4] sm:$0xf]
    %v1123 = vld [vmem:[%s2 + $0xe8] sm:$0xf]
    %v1124 = vld [vmem:[%s2 + $0xec] sm:$0xf]
    %v1125 = vld [vmem:[%s2 + $0x120] sm:$0xf]
    %v1126 = vld [vmem:[%s2 + $0x124] sm:$0xf]
    %v1127 = vld [vmem:[%s2 + $0x128] sm:$0xf]
    %v1128 = vld [vmem:[%s2 + $0x12c] sm:$0xf]
    %v1129 = vld [vmem:[%s2 + $0x160] sm:$0xf]
    %v1130 = vld [vmem:[%s2 + $0x164] sm:$0xf]
    %v1131 = vld [vmem:[%s2 + $0x168] sm:$0xf]
    %v1132 = vld [vmem:[%s2 + $0x16c] sm:$0xf]
    %v1133 = vld [vmem:[%s3 + $0x22] sm:$0x1]
    %v1134 = vperm.slane %v1133, 0
    %v1139 = vunpack.c.l.b16 %v1121
    %v1140 = vunpack.c.l.b16 %v1122
    %v1141 = vunpack.c.l.b16 %v1123
    %v1142 = vunpack.c.l.b16 %v1124
    %v1143 = vpack.c.b16 %v1140, %v1139
    %v1144 = vpack.c.b16 %v1142, %v1141
    %1147 = vmatpush.bf16.msra.mxu0 0
    %1148 = vmatpush.bf16.msra.mxu0 0
    %1149 = vmatpush.bf16.msra.mxu0 0
    %1150 = vmatpush.bf16.msra.mxu0 0
    %1151 = vmatpush.bf16.msra.mxu0 0
    %1152 = vmatpush.bf16.msra.mxu0 0
    %1153 = vmatpush.bf16.msra.mxu0 %v1144
    %1154 = vmatpush.bf16.msra.mxu0 %v1143
    %1155 = vmatmul.bf16.gmra.mxu0 %v791
    %v1156 = vpop.f32.mrf.mxu0
    %v1157 = vadd.f32 %v1134, %v1156
    %v1158 = vpop.f32.mrf.mxu0
    %v1159 = vadd.f32 %v1134, %v1158
    %1160 = vdwg.mxu0
    %v1161 = vld [vmem:[%s3 + $0x2a] sm:$0x1]
    %v1162 = vperm.slane %v1161, 0
    %v1167 = vunpack.c.l.b16 %v1125
    %v1168 = vunpack.c.l.b16 %v1126
    %v1169 = vunpack.c.l.b16 %v1127
    %v1170 = vunpack.c.l.b16 %v1128
    %v1171 = vpack.c.b16 %v1168, %v1167
    %v1172 = vpack.c.b16 %v1170, %v1169
    %1175 = vmatpush.bf16.msra.mxu0 0
    %1176 = vmatpush.bf16.msra.mxu0 0
    %1177 = vmatpush.bf16.msra.mxu0 0
    %1178 = vmatpush.bf16.msra.mxu0 0
    %1179 = vmatpush.bf16.msra.mxu0 0
    %1180 = vmatpush.bf16.msra.mxu0 0
    %1181 = vmatpush.bf16.msra.mxu0 %v1172
    %1182 = vmatpush.bf16.msra.mxu0 %v1171
    %1183 = vmatmul.bf16.gmra.mxu0 %v822
    %v1184 = vpop.f32.mrf.mxu0
    %v1185 = vadd.f32 %v1162, %v1184
    %v1186 = vpop.f32.mrf.mxu0
    %v1187 = vadd.f32 %v1162, %v1186
    %1188 = vmatmul.bf16.gmra.mxu0 %v825
    %v1189 = vpop.f32.mrf.mxu0
    %v1190 = vadd.f32 %v1162, %v1189
    %v1191 = vpop.f32.mrf.mxu0
    %v1192 = vadd.f32 %v1162, %v1191
    %1193 = vdwg.mxu0
    %v1194 = vld [vmem:[%s3 + $0x32] sm:$0x1]
    %v1195 = vperm.slane %v1194, 0
    %v1200 = vunpack.c.l.b16 %v1129
    %v1201 = vunpack.c.l.b16 %v1130
    %v1202 = vunpack.c.l.b16 %v1131
    %v1203 = vunpack.c.l.b16 %v1132
    %v1204 = vpack.c.b16 %v1201, %v1200
    %v1205 = vpack.c.b16 %v1203, %v1202
    %1208 = vmatpush.bf16.msra.mxu0 0
    %1209 = vmatpush.bf16.msra.mxu0 0
    %1210 = vmatpush.bf16.msra.mxu0 0
    %1211 = vmatpush.bf16.msra.mxu0 0
    %1212 = vmatpush.bf16.msra.mxu0 0
    %1213 = vmatpush.bf16.msra.mxu0 0
    %1214 = vmatpush.bf16.msra.mxu0 %v1205
    %1215 = vmatpush.bf16.msra.mxu0 %v1204
    %1216 = vmatmul.bf16.gmra.mxu0 %v822
    %v1217 = vpop.f32.mrf.mxu0
    %v1218 = vadd.f32 %v1195, %v1217
    %v1219 = vpop.f32.mrf.mxu0
    %v1220 = vadd.f32 %v1195, %v1219
    %1221 = vmatmul.bf16.gmra.mxu0 %v825
    %v1222 = vpop.f32.mrf.mxu0
    %v1223 = vadd.f32 %v1195, %v1222
    %v1224 = vpop.f32.mrf.mxu0
    %v1225 = vadd.f32 %v1195, %v1224
    %1226 = vdwg.mxu0
    %v1227 = vpack.c.bf16 %v1159, %v1157
    %v1228 = vpack.c.bf16 %v1187, %v1185
    %v1229 = vpack.c.bf16 %v1192, %v1190
    %v1231 = vsel %vm154, %v1227, 0
    %v1234 = vsel %vm154, %v1228, 0
    %v1237 = vsel %vm154, %v1229, 0
    %1239 = vmatpush.bf16.xpose.msra.mxu0 0
    %1240 = vmatpush.bf16.xpose.msra.mxu0 0
    %1241 = vmatpush.bf16.xpose.msra.mxu0 0
    %1242 = vmatpush.bf16.xpose.msra.mxu0 0
    %1243 = vmatpush.bf16.xpose.msra.mxu0 0
    %1244 = vmatpush.bf16.xpose.msra.mxu0 0
    %1245 = vmatpush.bf16.xpose.msra.mxu0 %v1237
    %1246 = vmatpush.bf16.xpose.msra.mxu0 %v1234
    %1247 = vmatmul.bf16.gmra.mxu0 %v1231
    %v1248 = vpop.f32.mrf.mxu0
    %v1249 = vadd.f32 %v49, %v1248
    %v1250 = vpop.f32.mrf.mxu0
    %v1251 = vadd.f32 %v50, %v1250
    %1252 = vdwg.mxu0
    %v1253 = vsel %vm78, %v1249, -inf
    %1254 = vmax.xlane.f32.xlu0 %v1253
    %v1255 = vpop.xlane.xlu0 %1254
    %v1256 = vsel %vm78, %v1251, -inf
    %1257 = vmax.xlane.f32.xlu0 %v1256
    %v1258 = vpop.xlane.xlu0 %1257
    %v1259 = vsub.f32 %v1249, %v1255
    %v1260 = vsub.f32 %v1251, %v1258
    %v1261 = vmul.f32 %v1259, 1.442695
    %v1262 = vpow.pop %v1261
    %v1263 = vmul.f32 %v1260, 1.442695
    %v1264 = vpow.pop %v1263
    %v1265 = vsel %vm78, %v1262, 0.0
    %1266 = vadd.xlane.f32.xlu0 %v1265
    %v1267 = vpop.xlane.xlu0 %1266
    %v1268 = vsel %vm78, %v1264, 0.0
    %1269 = vadd.xlane.f32.xlu0 %v1268
    %v1270 = vpop.xlane.xlu0 %1269
    %v1271 = vrcp.pop %v1267
    %v1272 = vrcp.pop %v1270
    %v1273 = vmul.f32 %v1262, %v1271
    %v1274 = vmul.f32 %v1264, %v1272
    %v1275 = vpack.c.bf16 %v1274, %v1273
    %v1276 = vpack.c.bf16 %v1220, %v1218
    %v1277 = vpack.c.bf16 %v1225, %v1223
    %v1279 = vsel %vm78, %v1275, 0
    %1281 = vmatpush.bf16.msra.mxu0 0
    %1282 = vmatpush.bf16.msra.mxu0 0
    %1283 = vmatpush.bf16.msra.mxu0 0
    %1284 = vmatpush.bf16.msra.mxu0 0
    %1285 = vmatpush.bf16.msra.mxu0 0
    %1286 = vmatpush.bf16.msra.mxu0 0
    %1287 = vmatpush.bf16.msra.mxu0 %v1277
    %1288 = vmatpush.bf16.msra.mxu0 %v1276
    %1289 = vmatmul.bf16.gmra.mxu0 %v1279
    %v1290 = vpop.f32.mrf.mxu0
    %v1291 = vadd.f32 0.0, %v1290
    %v1292 = vpop.f32.mrf.mxu0
    %v1293 = vadd.f32 0.0, %v1292
    %1294 = vdwg.mxu0
    %v1295 = vadd.f32 %v1117, %v1291
    %v1296 = vadd.f32 %v1119, %v1293
    %v1297 = vld [vmem:[%s2 + $0xf0] sm:$0xf]
    %v1298 = vld [vmem:[%s2 + $0xf4] sm:$0xf]
    %v1299 = vld [vmem:[%s2 + $0xf8] sm:$0xf]
    %v1300 = vld [vmem:[%s2 + $0xfc] sm:$0xf]
    %v1301 = vld [vmem:[%s2 + $0x130] sm:$0xf]
    %v1302 = vld [vmem:[%s2 + $0x134] sm:$0xf]
    %v1303 = vld [vmem:[%s2 + $0x138] sm:$0xf]
    %v1304 = vld [vmem:[%s2 + $0x13c] sm:$0xf]
    %v1305 = vld [vmem:[%s2 + $0x170] sm:$0xf]
    %v1306 = vld [vmem:[%s2 + $0x174] sm:$0xf]
    %v1307 = vld [vmem:[%s2 + $0x178] sm:$0xf]
    %v1308 = vld [vmem:[%s2 + $0x17c] sm:$0xf]
    %v1309 = vld [vmem:[%s3 + $0x23] sm:$0x1]
    %v1310 = vperm.slane %v1309, 0
    %v1315 = vunpack.c.l.b16 %v1297
    %v1316 = vunpack.c.l.b16 %v1298
    %v1317 = vunpack.c.l.b16 %v1299
    %v1318 = vunpack.c.l.b16 %v1300
    %v1319 = vpack.c.b16 %v1316, %v1315
    %v1320 = vpack.c.b16 %v1318, %v1317
    %1323 = vmatpush.bf16.msra.mxu0 0
    %1324 = vmatpush.bf16.msra.mxu0 0
    %1325 = vmatpush.bf16.msra.mxu0 0
    %1326 = vmatpush.bf16.msra.mxu0 0
    %1327 = vmatpush.bf16.msra.mxu0 0
    %1328 = vmatpush.bf16.msra.mxu0 0
    %1329 = vmatpush.bf16.msra.mxu0 %v1320
    %1330 = vmatpush.bf16.msra.mxu0 %v1319
    %1331 = vmatmul.bf16.gmra.mxu0 %v791
    %v1332 = vpop.f32.mrf.mxu0
    %v1333 = vadd.f32 %v1310, %v1332
    %v1334 = vpop.f32.mrf.mxu0
    %v1335 = vadd.f32 %v1310, %v1334
    %1336 = vdwg.mxu0
    %v1337 = vld [vmem:[%s3 + $0x2b] sm:$0x1]
    %v1338 = vperm.slane %v1337, 0
    %v1343 = vunpack.c.l.b16 %v1301
    %v1344 = vunpack.c.l.b16 %v1302
    %v1345 = vunpack.c.l.b16 %v1303
    %v1346 = vunpack.c.l.b16 %v1304
    %v1347 = vpack.c.b16 %v1344, %v1343
    %v1348 = vpack.c.b16 %v1346, %v1345
    %1351 = vmatpush.bf16.msra.mxu0 0
    %1352 = vmatpush.bf16.msra.mxu0 0
    %1353 = vmatpush.bf16.msra.mxu0 0
    %1354 = vmatpush.bf16.msra.mxu0 0
    %1355 = vmatpush.bf16.msra.mxu0 0
    %1356 = vmatpush.bf16.msra.mxu0 0
    %1357 = vmatpush.bf16.msra.mxu0 %v1348
    %1358 = vmatpush.bf16.msra.mxu0 %v1347
    %1359 = vmatmul.bf16.gmra.mxu0 %v822
    %v1360 = vpop.f32.mrf.mxu0
    %v1361 = vadd.f32 %v1338, %v1360
    %v1362 = vpop.f32.mrf.mxu0
    %v1363 = vadd.f32 %v1338, %v1362
    %1364 = vmatmul.bf16.gmra.mxu0 %v825
    %v1365 = vpop.f32.mrf.mxu0
    %v1366 = vadd.f32 %v1338, %v1365
    %v1367 = vpop.f32.mrf.mxu0
    %v1368 = vadd.f32 %v1338, %v1367
    %1369 = vdwg.mxu0
    %v1370 = vld [vmem:[%s3 + $0x33] sm:$0x1]
    %v1371 = vperm.slane %v1370, 0
    %v1376 = vunpack.c.l.b16 %v1305
    %v1377 = vunpack.c.l.b16 %v1306
    %v1378 = vunpack.c.l.b16 %v1307
    %v1379 = vunpack.c.l.b16 %v1308
    %v1380 = vpack.c.b16 %v1377, %v1376
    %v1381 = vpack.c.b16 %v1379, %v1378
    %1384 = vmatpush.bf16.msra.mxu0 0
    %1385 = vmatpush.bf16.msra.mxu0 0
    %1386 = vmatpush.bf16.msra.mxu0 0
    %1387 = vmatpush.bf16.msra.mxu0 0
    %1388 = vmatpush.bf16.msra.mxu0 0
    %1389 = vmatpush.bf16.msra.mxu0 0
    %1390 = vmatpush.bf16.msra.mxu0 %v1381
    %1391 = vmatpush.bf16.msra.mxu0 %v1380
    %1392 = vmatmul.bf16.gmra.mxu0 %v822
    %v1393 = vpop.f32.mrf.mxu0
    %v1394 = vadd.f32 %v1371, %v1393
    %v1395 = vpop.f32.mrf.mxu0
    %v1396 = vadd.f32 %v1371, %v1395
    %1397 = vmatmul.bf16.gmra.mxu0 %v825
    %v1398 = vpop.f32.mrf.mxu0
    %v1399 = vadd.f32 %v1371, %v1398
    %v1400 = vpop.f32.mrf.mxu0
    %v1401 = vadd.f32 %v1371, %v1400
    %1402 = vdwg.mxu0
    %v1403 = vpack.c.bf16 %v1335, %v1333
    %v1404 = vpack.c.bf16 %v1363, %v1361
    %v1405 = vpack.c.bf16 %v1368, %v1366
    %v1407 = vsel %vm154, %v1403, 0
    %v1410 = vsel %vm154, %v1404, 0
    %v1413 = vsel %vm154, %v1405, 0
    %1415 = vmatpush.bf16.xpose.msra.mxu0 0
    %1416 = vmatpush.bf16.xpose.msra.mxu0 0
    %1417 = vmatpush.bf16.xpose.msra.mxu0 0
    %1418 = vmatpush.bf16.xpose.msra.mxu0 0
    %1419 = vmatpush.bf16.xpose.msra.mxu0 0
    %1420 = vmatpush.bf16.xpose.msra.mxu0 0
    %1421 = vmatpush.bf16.xpose.msra.mxu0 %v1413
    %1422 = vmatpush.bf16.xpose.msra.mxu0 %v1410
    %1423 = vmatmul.bf16.gmra.mxu0 %v1407
    %v1424 = vpop.f32.mrf.mxu0
    %v1425 = vadd.f32 %v49, %v1424
    %v1426 = vpop.f32.mrf.mxu0
    %v1427 = vadd.f32 %v50, %v1426
    %1428 = vdwg.mxu0
    %v1429 = vsel %vm78, %v1425, -inf
    %1430 = vmax.xlane.f32.xlu0 %v1429
    %v1431 = vpop.xlane.xlu0 %1430
    %v1432 = vsel %vm78, %v1427, -inf
    %1433 = vmax.xlane.f32.xlu0 %v1432
    %v1434 = vpop.xlane.xlu0 %1433
    %v1435 = vsub.f32 %v1425, %v1431
    %v1436 = vsub.f32 %v1427, %v1434
    %v1437 = vmul.f32 %v1435, 1.442695
    %v1438 = vpow.pop %v1437
    %v1439 = vmul.f32 %v1436, 1.442695
    %v1440 = vpow.pop %v1439
    %v1441 = vsel %vm78, %v1438, 0.0
    %1442 = vadd.xlane.f32.xlu0 %v1441
    %v1443 = vpop.xlane.xlu0 %1442
    %v1444 = vsel %vm78, %v1440, 0.0
    %1445 = vadd.xlane.f32.xlu0 %v1444
    %v1446 = vpop.xlane.xlu0 %1445
    %v1447 = vrcp.pop %v1443
    %v1448 = vrcp.pop %v1446
    %v1449 = vmul.f32 %v1438, %v1447
    %v1450 = vmul.f32 %v1440, %v1448
    %v1451 = vpack.c.bf16 %v1450, %v1449
    %v1452 = vpack.c.bf16 %v1396, %v1394
    %v1453 = vpack.c.bf16 %v1401, %v1399
    %v1455 = vsel %vm78, %v1451, 0
    %1457 = vmatpush.bf16.msra.mxu0 0
    %1458 = vmatpush.bf16.msra.mxu0 0
    %1459 = vmatpush.bf16.msra.mxu0 0
    %1460 = vmatpush.bf16.msra.mxu0 0
    %1461 = vmatpush.bf16.msra.mxu0 0
    %1462 = vmatpush.bf16.msra.mxu0 0
    %1463 = vmatpush.bf16.msra.mxu0 %v1453
    %1464 = vmatpush.bf16.msra.mxu0 %v1452
    %1465 = vmatmul.bf16.gmra.mxu0 %v1455
    %v1466 = vpop.f32.mrf.mxu0
    %v1467 = vadd.f32 0.0, %v1466
    %v1468 = vpop.f32.mrf.mxu0
    %v1469 = vadd.f32 0.0, %v1468
    %1470 = vdwg.mxu0
    %v1471 = vadd.f32 %v1295, %v1467
    %v1472 = vadd.f32 %v1296, %v1469
    %v1473 = vld [vmem:[%s3 + $0x38] sm:$0x1]
    %v1474 = vperm.slane %v1473, 0
    %v1475 = vadd.f32 %v1471, %v1474
    %v1476 = vadd.f32 %v1472, %v1474
    %v1477 = vadd.f32 %v761, %v1475
    %v1478 = vadd.f32 %v762, %v1476
    %v1479 = vld [vmem:[%s3 + $0x51] sm:$0x1]
    %v1480 = vld [vmem:[%s3 + $0x59] sm:$0x1]
    %v1481 = vsel %vm78, %v1477, 0.0
    %1482 = vadd.xlane.f32.xlu0 %v1481
    %v1483 = vpop.xlane.xlu0 %1482
    %v1484 = vsel %vm78, %v1478, 0.0
    %1485 = vadd.xlane.f32.xlu0 %v1484
    %v1486 = vpop.xlane.xlu0 %1485
    %v1487 = vmul.f32 %v1483, %v718
    %v1488 = vmul.f32 %v1486, %v718
    %v1489 = vsub.f32 %v1477, %v1487
    %v1490 = vsub.f32 %v1478, %v1488
    %v1491 = vmul.f32 %v1489, %v1489
    %v1492 = vmul.f32 %v1490, %v1490
    %v1493 = vsel %vm78, %v1491, 0.0
    %1494 = vadd.xlane.f32.xlu0 %v1493
    %v1495 = vpop.xlane.xlu0 %1494
    %v1496 = vsel %vm78, %v1492, 0.0
    %1497 = vadd.xlane.f32.xlu0 %v1496
    %v1498 = vpop.xlane.xlu0 %1497
    %v1499 = vmul.f32 %v1495, %v718
    %v1500 = vmul.f32 %v1498, %v718
    %v1501 = vadd.f32 %v1499, 1e-05
    %v1502 = vadd.f32 %v1500, 1e-05
    %v1503 = vrsqrt.pop %v1501
    %v1504 = vmul.f32 %v1503, %v1501
    %v1505 = vmul.f32 %v1504, %v1503
    %v1506 = vmul.f32 0.5, %v1505
    %v1507 = vsub.f32 1.5, %v1506
    %v1508 = vmul.f32 %v1503, %v1507
    %vm1509 = vweird.f32 %v1501
    %vm1510 = vweird.f32 %v1503
    %vm1511 = vmor %vm1509, %vm1510
    %v1512 = vsel %vm1511, %v1503, %v1508
    %v1513 = vrsqrt.pop %v1502
    %v1514 = vmul.f32 %v1513, %v1502
    %v1515 = vmul.f32 %v1514, %v1513
    %v1516 = vmul.f32 0.5, %v1515
    %v1517 = vsub.f32 1.5, %v1516
    %v1518 = vmul.f32 %v1513, %v1517
    %vm1519 = vweird.f32 %v1502
    %vm1520 = vweird.f32 %v1513
    %vm1521 = vmor %vm1519, %vm1520
    %v1522 = vsel %vm1521, %v1513, %v1518
    %v1523 = vmul.f32 %v1489, %v1512
    %v1524 = vmul.f32 %v1490, %v1522
    %v1525 = vperm.slane %v1479, 0
    %v1526 = vmul.f32 %v1523, %v1525
    %v1527 = vmul.f32 %v1524, %v1525
    %v1528 = vperm.slane %v1480, 0
    %v1529 = vadd.f32 %v1526, %v1528
    %v1530 = vadd.f32 %v1527, %v1528
    %v1531 = vpack.c.bf16 %v1530, %v1529
    %v1532 = vld [vmem:[%s2 + $0x180] sm:$0xf]
    %v1533 = vld [vmem:[%s2 + $0x184] sm:$0xf]
    %v1534 = vld [vmem:[%s2 + $0x188] sm:$0xf]
    %v1535 = vld [vmem:[%s2 + $0x18c] sm:$0xf]
    %v1536 = vld [vmem:[%s3 + $0x40] sm:$0x1]
    %v1537 = vperm.slane %v1536, 0
    %v1542 = vunpack.c.l.b16 %v1532
    %v1543 = vunpack.c.l.b16 %v1533
    %v1544 = vunpack.c.l.b16 %v1534
    %v1545 = vunpack.c.l.b16 %v1535
    %v1546 = vpack.c.b16 %v1543, %v1542
    %v1547 = vpack.c.b16 %v1545, %v1544
    %v1551 = vsel %vm78, %v1531, 0
    %1553 = vmatpush.bf16.msra.mxu0 0
    %1554 = vmatpush.bf16.msra.mxu0 0
    %1555 = vmatpush.bf16.msra.mxu0 0
    %1556 = vmatpush.bf16.msra.mxu0 0
    %1557 = vmatpush.bf16.msra.mxu0 0
    %1558 = vmatpush.bf16.msra.mxu0 0
    %1559 = vmatpush.bf16.msra.mxu0 %v1547
    %1560 = vmatpush.bf16.msra.mxu0 %v1546
    %1561 = vmatmul.bf16.gmra.mxu0 %v1551
    %v1562 = vpop.f32.mrf.mxu0
    %v1563 = vadd.f32 %v1537, %v1562
    %v1564 = vpop.f32.mrf.mxu0
    %v1565 = vadd.f32 %v1537, %v1564
    %1566 = vdwg.mxu0
    %v1567 = vmax.f32 %v1563, 0.0
    %v1568 = vmax.f32 %v1565, 0.0
    %v1569 = vpack.c.bf16 %v1568, %v1567
    %v1570 = vld [vmem:[%s2 + $0x190] sm:$0xf]
    %v1571 = vld [vmem:[%s2 + $0x194] sm:$0xf]
    %v1572 = vld [vmem:[%s2 + $0x198] sm:$0xf]
    %v1573 = vld [vmem:[%s2 + $0x19c] sm:$0xf]
    %v1574 = vld [vmem:[%s2 + $0x1a0] sm:$0xf]
    %v1575 = vld [vmem:[%s2 + $0x1a4] sm:$0xf]
    %v1576 = vld [vmem:[%s2 + $0x1a8] sm:$0xf]
    %v1577 = vld [vmem:[%s2 + $0x1ac] sm:$0xf]
    %v1578 = vld [vmem:[%s3 + $0x48] sm:$0x1]
    %v1579 = vperm.slane %v1578, 0
    %v1588 = vunpack.c.l.b16 %v1570
    %v1589 = vunpack.c.l.b16 %v1571
    %v1590 = vunpack.c.l.b16 %v1572
    %v1591 = vunpack.c.l.b16 %v1573
    %v1592 = vunpack.c.l.b16 %v1574
    %v1593 = vunpack.c.l.b16 %v1575
    %v1594 = vunpack.c.l.b16 %v1576
    %v1595 = vunpack.c.l.b16 %v1577
    %v1596 = vpack.c.b16 %v1589, %v1588
    %v1597 = vpack.c.b16 %v1591, %v1590
    %v1598 = vpack.c.b16 %v1593, %v1592
    %v1599 = vpack.c.b16 %v1595, %v1594
    %vm1604 = vcmask 523264
    %v1606 = vsel %vm1604, %v1569, 0
    %1608 = vmatpush.bf16.msra.mxu0 0
    %1609 = vmatpush.bf16.msra.mxu0 0
    %1610 = vmatpush.bf16.msra.mxu0 0
    %1611 = vmatpush.bf16.msra.mxu0 0
    %1612 = vmatpush.bf16.msra.mxu0 %v1599
    %1613 = vmatpush.bf16.msra.mxu0 %v1598
    %1614 = vmatpush.bf16.msra.mxu0 %v1597
    %1615 = vmatpush.bf16.msra.mxu0 %v1596
    %1616 = vmatmul.bf16.gmra.mxu0 %v1606
    %v1617 = vpop.f32.mrf.mxu0
    %v1618 = vadd.f32 %v1579, %v1617
    %v1619 = vpop.f32.mrf.mxu0
    %v1620 = vadd.f32 %v1579, %v1619
    %1621 = vdwg.mxu0
    %v1622 = vadd.f32 %v1529, %v1618
    %v1623 = vadd.f32 %v1530, %v1620
    %v1624 = vld [vmem:[%s3 + $0x52] sm:$0x1]
    %v1625 = vld [vmem:[%s3 + $0x5a] sm:$0x1]
    %v1626 = vsel %vm78, %v1622, 0.0
    %1627 = vadd.xlane.f32.xlu0 %v1626
    %v1628 = vpop.xlane.xlu0 %1627
    %v1629 = vsel %vm78, %v1623, 0.0
    %1630 = vadd.xlane.f32.xlu0 %v1629
    %v1631 = vpop.xlane.xlu0 %1630
    %v1632 = vmul.f32 %v1628, %v718
    %v1633 = vmul.f32 %v1631, %v718
    %v1634 = vsub.f32 %v1622, %v1632
    %v1635 = vsub.f32 %v1623, %v1633
    %v1636 = vmul.f32 %v1634, %v1634
    %v1637 = vmul.f32 %v1635, %v1635
    %v1638 = vsel %vm78, %v1636, 0.0
    %1639 = vadd.xlane.f32.xlu0 %v1638
    %v1640 = vpop.xlane.xlu0 %1639
    %v1641 = vsel %vm78, %v1637, 0.0
    %1642 = vadd.xlane.f32.xlu0 %v1641
    %v1643 = vpop.xlane.xlu0 %1642
    %v1644 = vmul.f32 %v1640, %v718
    %v1645 = vmul.f32 %v1643, %v718
    %v1646 = vadd.f32 %v1644, 1e-05
    %v1647 = vadd.f32 %v1645, 1e-05
    %v1648 = vrsqrt.pop %v1646
    %v1649 = vmul.f32 %v1648, %v1646
    %v1650 = vmul.f32 %v1649, %v1648
    %v1651 = vmul.f32 0.5, %v1650
    %v1652 = vsub.f32 1.5, %v1651
    %v1653 = vmul.f32 %v1648, %v1652
    %vm1654 = vweird.f32 %v1646
    %vm1655 = vweird.f32 %v1648
    %vm1656 = vmor %vm1654, %vm1655
    %v1657 = vsel %vm1656, %v1648, %v1653
    %v1658 = vrsqrt.pop %v1647
    %v1659 = vmul.f32 %v1658, %v1647
    %v1660 = vmul.f32 %v1659, %v1658
    %v1661 = vmul.f32 0.5, %v1660
    %v1662 = vsub.f32 1.5, %v1661
    %v1663 = vmul.f32 %v1658, %v1662
    %vm1664 = vweird.f32 %v1647
    %vm1665 = vweird.f32 %v1658
    %vm1666 = vmor %vm1664, %vm1665
    %v1667 = vsel %vm1666, %v1658, %v1663
    %v1668 = vmul.f32 %v1634, %v1657
    %v1669 = vmul.f32 %v1635, %v1667
    %v1670 = vperm.slane %v1624, 0
    %v1671 = vmul.f32 %v1668, %v1670
    %v1672 = vmul.f32 %v1669, %v1670
    %v1673 = vperm.slane %v1625, 0
    %v1674 = vadd.f32 %v1671, %v1673
    %v1675 = vadd.f32 %v1672, %v1673
    %1676 = vst.msk [vmem:[#allocation2] sm:$0xff] %vm78, %v1674
    %1677 = vst.msk [vmem:[#allocation2 + $0x8] sm:$0xff] %vm78, %v1675
    // Predicated region
    $region18: #{tpu_custom_call.1} parent=1 // pred_check
      _
    $region19: #{tpu_custom_call.1} parent=1 // pred_check_branch
      %1679 = sbr.rel (0) target = $region21
    $region20: #{tpu_custom_call.1} parent=1 // pred_region
      %1681 = vsyncadd [#allocation3], 0
      %s1682 = sshll.u32 [#allocation2], 4
      %s1683 = int_to_ptr.vmem [resolvable:$true] %s1682
      %s1684 = sshll.u32 %s4, 4
      %s1685 = int_to_ptr.hbm [resolvable:$true] %s1684
      %1690 = dma.vmem_to_hbm [thread:$0]  %s1683, 256, %s1685, [#allocation3], 128, 128, 8
    $region21: #{tpu_custom_call.1} parent=1 // pred_fallthru
      _
    // Predicated region
    $region22: #{tpu_custom_call.1} parent=1 // pred_check
      _
    $region23: #{tpu_custom_call.1} parent=1 // pred_check_branch
      %1692 = sbr.rel (0) target = $region25
    $region24: #{tpu_custom_call.1} parent=1 // pred_region
      %1694 = dma.done [#allocation3], 256
    $region25: #{tpu_custom_call.1} parent=1 // pred_fallthru
      _
    %1695 = vsyncpa [#allocation3], 1

</llo_original>
